<compile_context>
chip_gen: v6e
topology: v6e:2x2x1
jax: 0.10.0
libtpu: 0.0.40
codegen_flags: <defaults>
</compile_context>

<pallas_src>
import jax
import jax.numpy as jnp
from jax.experimental import pallas as pl
from jax.experimental.pallas import tpu as pltpu


# ---------------------------------------------------------------------------
# Parameter init (deterministic, matches the shapes declared in __init__)
# ---------------------------------------------------------------------------
def init_params(key, fan_in, td_fan_in, diff_fan_in, K, timesteps):
    ks = jax.random.split(key, 9)
    n = lambda k, s, scale=0.1: scale * jax.random.normal(k, s, jnp.float32)
    u1b = jnp.log(jax.random.uniform(ks[8], (fan_in,), jnp.float32,
                                     minval=1.0,
                                     maxval=float(max(timesteps - 1, 2))))
    return {
        "remap_0.weight": n(ks[0], (diff_fan_in, td_fan_in, 1, 1)),
        "remap_0.bias":   n(ks[1], (diff_fan_in,)),
        "remap_1.weight": n(ks[2], (fan_in, diff_fan_in, 1, 1)),
        "remap_1.bias":   n(ks[3], (fan_in,)),
        "u1_gate.weight": n(ks[4], (fan_in, fan_in, 1, 1), 0.3),
        "u2_gate.weight": n(ks[5], (fan_in, fan_in, 1, 1), 0.3),
        "w_gate_inh":     n(ks[6], (fan_in, fan_in, K, K), 0.1),
        "w_gate_exc":     n(ks[7], (fan_in, fan_in, K, K), 0.1),
        "alpha": jnp.full((fan_in, 1, 1), 0.1, jnp.float32),
        "mu":    jnp.full((fan_in, 1, 1), 1.0, jnp.float32),
        "w":     jnp.full((fan_in, 1, 1), 0.5, jnp.float32),
        "kappa": jnp.full((fan_in, 1, 1), 0.5, jnp.float32),
        "u1_gate.bias": u1b,
        "u2_gate.bias": -u1b,
    }


# ---------------------------------------------------------------------------
# Weight packing for the lane-dense (rows, W*C) layout (hoist out of the
# per-timestep path: build once, reuse every step).
# ---------------------------------------------------------------------------
def _band_matrix(wt_oihw, ky, W):
    """(W*Cin, W*Cout) band matrix: the kx / channel part of a 'SAME' KxK conv
    on the lane-packed index (w*C + c), for vertical tap ky."""
    Cout, Cin, K, _ = wt_oihw.shape
    p = K // 2
    B = jnp.zeros((W * Cin, W * Cout), jnp.float32)
    for w_out in range(W):
        for kx in range(K):
            w_in = w_out + kx - p
            if 0 <= w_in < W:
                blk = jnp.transpose(wt_oihw[:, :, ky, kx], (1, 0)).astype(jnp.float32)
                B = B.at[w_in * Cin:(w_in + 1) * Cin,
                         w_out * Cout:(w_out + 1) * Cout].set(blk)
    return B


def prepare_kernel_params(params, H, W, Hh, Wh):
    r0w = params["remap_0.weight"]          # (Cd, Ct, 1, 1)
    r1w = params["remap_1.weight"]          # (Cf, Cd, 1, 1)
    u1w = params["u1_gate.weight"]          # (Cf, Cf, 1, 1)
    u2w = params["u2_gate.weight"]          # (Cf, Cf, 1, 1)
    winh = params["w_gate_inh"]             # (Cf, Cf, K, K)
    wexc = params["w_gate_exc"]
    Cd = r0w.shape[0]
    Cf = r1w.shape[0]
    K = winh.shape[2]
    pad = K // 2

    eyeW = jnp.eye(W, dtype=jnp.float32)
    blockdiag = lambda w2: jnp.kron(eyeW, w2.astype(jnp.float32))
    to2 = lambda w4: jnp.transpose(w4[:, :, 0, 0], (1, 0))   # (O,I,1,1) -> (I,O)

    # nearest W-upsample folded into remap_0's block matrix: (Wh*Ct, W*Cd)
    w_src = jnp.floor(jnp.arange(W) * (Wh / W)).astype(jnp.int32)
    S = (jnp.arange(Wh)[:, None] == w_src[None, :]).astype(jnp.float32)  # (Wh, W)
    r0f = jnp.kron(S, to2(r0w).astype(jnp.float32))

    r1bd = blockdiag(to2(r1w))                                # (W*Cd, W*Cf)
    u1bd = blockdiag(to2(u1w))                                # (W*Cf, W*Cf)
    u2bd = blockdiag(to2(u2w))

    winh_bands = jnp.stack([_band_matrix(winh, ky, W) for ky in range(K)])
    wexc_bands = [_band_matrix(wexc, ky, W) for ky in range(K)]
    # fuse the u2 1x1 gate onto the (unshifted) centre tap of the exc conv
    wexc_center = jnp.concatenate([wexc_bands[pad], u2bd], axis=1)   # (WCf, 2*WCf)
    wexc_off = jnp.stack([wexc_bands[ky] for ky in range(K) if ky != pad])

    # nearest H-upsample as a 0/1 row-replication matrix (H, Hh)
    h_src = jnp.floor(jnp.arange(H) * (Hh / H)).astype(jnp.int32)
    Rh = (h_src[:, None] == jnp.arange(Hh)[None, :]).astype(jnp.float32)

    tile = lambda v: jnp.tile(v.reshape(-1).astype(jnp.float32), W)
    r0b = tile(params["remap_0.bias"])[None, :]               # (1, W*Cd)
    pvec = jnp.stack([                                        # (8, W*Cf)
        tile(params["remap_1.bias"]),
        tile(params["u1_gate.bias"]),
        tile(params["u2_gate.bias"]),
        tile(params["alpha"]),
        tile(params["mu"]),
        tile(params["w"]),
        tile(params["kappa"]),
        jnp.zeros((W * Cf,), jnp.float32),
    ])

    return dict(Rh=Rh, r0f=r0f, r0b=r0b, r1bd=r1bd, u1bd=u1bd,
                winh=winh_bands, wexc_c=wexc_center, wexc_o=wexc_off, pvec=pvec)


# ---------------------------------------------------------------------------
# Pallas kernel: one grid step == one batch image, everything lane-dense
# ---------------------------------------------------------------------------
def _make_kernel(K):
    pad = K // 2
    off_dy = tuple(ky - pad for ky in range(K) if ky != pad)  # matches wexc_o order
    f32 = jnp.float32

    def softplus(x):  # torch softplus (beta=1, threshold=20)
        return jnp.where(x > 20.0, x, jnp.log1p(jnp.exp(jnp.minimum(x, 20.0))))

    def sigmoid(x):   # exp + approximate reciprocal -> EUP slot
        return pl.reciprocal(1.0 + jnp.exp(-x), approx=True)

    def shift_rows(x, dy):
        # vertical (H) shift with zero fill == the conv's zero padding in H
        if dy == 0:
            return x
        z = jnp.zeros((abs(dy), x.shape[1]), x.dtype)
        if dy > 0:
            return jnp.concatenate([x[dy:, :], z], axis=0)
        return jnp.concatenate([z, x[:dy, :]], axis=0)

    def kernel(lower_ref, hi_ref, rh_ref, r0f_ref, r0b_ref, r1bd_ref, u1bd_ref,
               winh_ref, wexc_c_ref, wexc_o_ref, pvec_ref, out_ref):
        pv = pvec_ref[...]
        r1b, u1b, u2b = pv[0:1], pv[1:2], pv[2:3]
        alpha, mu, w_p, kappa = pv[3:4], pv[4:5], pv[5:6], pv[6:7]

        # -- top-down remap: 1x1 convs as 128-deep block-diagonal matmuls.
        #    W-upsample is folded into r0f; H-upsample is deferred, so these
        #    run on the low-resolution rows (Hh).
        hi = hi_ref[...]                                                    # (Hh, Wh*Ct)
        ps = softplus(jnp.dot(hi, r0f_ref[...],
                              preferred_element_type=f32) + r0b_ref[...])   # (Hh, W*Cd)
        ps = softplus(jnp.dot(ps, r1bd_ref[...],
                              preferred_element_type=f32) + r1b)            # (Hh, W*Cf)
        g1 = sigmoid(jnp.dot(ps, u1bd_ref[...],
                             preferred_element_type=f32) + u1b)
        prod = ps * g1

        # nearest H-upsample as a 0/1 replication matmul
        rh = rh_ref[...]                                                    # (H, Hh)
        ps = jnp.dot(rh, ps, preferred_element_type=f32)                    # (H, W*Cf)
        prod = jnp.dot(rh, prod, preferred_element_type=f32)

        # -- inhibition KxK conv: K banded matmuls over row-shifted inputs
        c1 = jnp.dot(prod, winh_ref[pad, :, :], preferred_element_type=f32)
        for ky in range(K):
            if ky == pad:
                continue
            c1 = c1 + jnp.dot(shift_rows(prod, ky - pad), winh_ref[ky, :, :],
                              preferred_element_type=f32)
        inh = softplus(c1 * (alpha * ps + mu))

        lower = lower_ref[...]                                              # (H, W*Cf)
        supp = softplus(lower - inh)

        # -- excitation conv; u2 gate fused onto the centre tap (shared input)
        wc = wexc_c_ref.shape[0]
        cg = jnp.dot(supp, wexc_c_ref[...], preferred_element_type=f32)     # (H, 2*WCf)
        exc = cg[:, :wc]
        g2 = sigmoid(cg[:, wc:] + u2b)
        for i, dy in enumerate(off_dy):
            exc = exc + jnp.dot(shift_rows(supp, dy), wexc_o_ref[i, :, :],
                                preferred_element_type=f32)

        h2 = softplus(kappa * (supp + exc) + w_p * supp * exc)
        out_ref[...] = (1.0 - g2) * lower + g2 * h2

    return kernel


def td_conv_gru_cell_forward(lower_nchw, higher_nchw, kparams):
    N, Cf, H, W = lower_nchw.shape
    _, Ct, Hh, Wh = higher_nchw.shape
    K = kparams["winh"].shape[0]
    WC, WhCt = W * Cf, Wh * Ct

    # lane-dense layout: fold (W, C) into the last (lane) dim
    lower2d = jnp.transpose(lower_nchw, (0, 2, 3, 1)).reshape(N * H, WC)
    lower2d = lower2d.astype(jnp.float32)
    hi2d = jnp.transpose(higher_nchw, (0, 2, 3, 1)).reshape(N * Hh, WhCt)
    hi2d = hi2d.astype(jnp.float32)

    kernel = _make_kernel(K)

    def full_spec(a):   # weights: whole-array block, constant index map ->
        return pl.BlockSpec(a.shape, lambda n, nd=a.ndim: (0,) * nd)  # VMEM-resident

    args = (lower2d, hi2d, kparams["Rh"], kparams["r0f"], kparams["r0b"],
            kparams["r1bd"], kparams["u1bd"], kparams["winh"],
            kparams["wexc_c"], kparams["wexc_o"], kparams["pvec"])
    in_specs = ([pl.BlockSpec((H, WC), lambda n: (n, 0)),
                 pl.BlockSpec((Hh, WhCt), lambda n: (n, 0))]
                + [full_spec(a) for a in args[2:]])

    out2d = pl.pallas_call(
        kernel,
        grid=(N,),
        out_shape=jax.ShapeDtypeStruct((N * H, WC), jnp.float32),
        in_specs=in_specs,
        out_specs=pl.BlockSpec((H, WC), lambda n: (n, 0)),
        compiler_params=pltpu.CompilerParams(
            dimension_semantics=("parallel",),        # shard batch over TCs (v7x)
            vmem_limit_bytes=32 * 1024 * 1024),       # explicit, fits v7x's 64MiB
    )(*args)

    return jnp.transpose(out2d.reshape(N, H, W, Cf), (0, 3, 1, 2))


# ---------------------------------------------------------------------------
# Pure-JAX reference (for correctness check)
# ---------------------------------------------------------------------------
def _nearest_upsample_nhwc(x, H, W):
    Hi, Wi = x.shape[1], x.shape[2]
    ih = jnp.floor(jnp.arange(H) * (Hi / H)).astype(jnp.int32)
    iw = jnp.floor(jnp.arange(W) * (Wi / W)).astype(jnp.int32)
    return x[:, ih][:, :, iw]


def reference_forward(lower_nchw, higher_nchw, params):
    lower = jnp.transpose(lower_nchw, (0, 2, 3, 1)).astype(jnp.float32)
    hi = jnp.transpose(higher_nchw, (0, 2, 3, 1)).astype(jnp.float32)
    N, H, W, Cf = lower.shape
    hi_up = _nearest_upsample_nhwc(hi, H, W)

    to2 = lambda w: jnp.transpose(w[:, :, 0, 0], (1, 0))
    row = lambda v: v.reshape(1, -1).astype(jnp.float32)

    def conv1x1(x, w, b):
        return jnp.einsum("nhwc,cd->nhwd", x, w) + b

    def convk(x, w_oihw):
        w = jnp.transpose(w_oihw, (2, 3, 1, 0))   # OIHW -> HWIO
        return jax.lax.conv_general_dilated(
            x, w, window_strides=(1, 1), padding="SAME",
            dimension_numbers=("NHWC", "HWIO", "NHWC"))

    sp, sg = jax.nn.softplus, jax.nn.sigmoid
    ps = sp(conv1x1(hi_up, to2(params["remap_0.weight"]), row(params["remap_0.bias"])))
    ps = sp(conv1x1(ps, to2(params["remap_1.weight"]), row(params["remap_1.bias"])))
    g1 = sg(conv1x1(ps, to2(params["u1_gate.weight"]), row(params["u1_gate.bias"])))
    c1 = convk(ps * g1, params["w_gate_inh"])
    inh = sp(c1 * (row(params["alpha"]) * ps + row(params["mu"])))
    supp = sp(lower - inh)
    g2 = sg(conv1x1(supp, to2(params["u2_gate.weight"]), row(params["u2_gate.bias"])))
    exc = convk(supp, params["w_gate_exc"])
    h2 = sp(row(params["kappa"]) * (supp + exc) + row(params["w"]) * supp * exc)
    op = (1.0 - g2) * lower + g2 * h2
    return jnp.transpose(op, (0, 3, 1, 2))


if __name__ == "__main__":
    fan_in, td_fan_in, diff_fan_in = 8, 16, 8
    K, timesteps = 3, 3
    N, H, W = 2, 16, 16          # W * fan_in = 128 -> exactly lane-dense
    Hh, Wh = 8, 8

    key = jax.random.PRNGKey(0)
    k_lower, k_higher, k_params = jax.random.split(key, 3)
    lower = jax.random.normal(k_lower, (N, fan_in, H, W), jnp.float32)
    higher = jax.random.normal(k_higher, (N, td_fan_in, Hh, Wh), jnp.float32)
    params = init_params(k_params, fan_in, td_fan_in, diff_fan_in, K, timesteps)

    # hoisted out of the per-timestep path: prepare once, reuse every step
    kparams = prepare_kernel_params(params, H, W, Hh, Wh)

    out = td_conv_gru_cell_forward(lower, higher, kparams)
    out = jax.block_until_ready(out)

    ref = reference_forward(lower, higher, params)
    assert out.shape == lower.shape
    max_diff = float(jnp.max(jnp.abs(out - ref)))
    # 2e-2 tolerance: kernel uses the EUP approximate reciprocal in sigmoid
    assert max_diff < 2e-2, f"mismatch vs reference: {max_diff}"
    print("KERNEL_OK")
</pallas_src>

<mosaic_0001>
module attributes {stable_mosaic.version = 11 : i64} {
  func.func @kernel(%arg0: i32, %arg1: memref<16x128xf32, #tpu.memory_space<vmem>>, %arg2: memref<8x128xf32, #tpu.memory_space<vmem>>, %arg3: memref<16x8xf32, #tpu.memory_space<vmem>>, %arg4: memref<128x128xf32, #tpu.memory_space<vmem>>, %arg5: memref<1x128xf32, #tpu.memory_space<vmem>>, %arg6: memref<128x128xf32, #tpu.memory_space<vmem>>, %arg7: memref<128x128xf32, #tpu.memory_space<vmem>>, %arg8: memref<3x128x128xf32, #tpu.memory_space<vmem>>, %arg9: memref<128x256xf32, #tpu.memory_space<vmem>>, %arg10: memref<2x128x128xf32, #tpu.memory_space<vmem>>, %arg11: memref<8x128xf32, #tpu.memory_space<vmem>>, %arg12: memref<16x128xf32, #tpu.memory_space<vmem>>) attributes {dimension_semantics = [#tpu.dimension_semantics<parallel>], iteration_bounds = array<i64: 2>, scalar_prefetch = 0 : i64, scratch_operands = 0 : i64, tpu.core_type = #tpu.core_type<tc>, window_params = [{transform_indices = @transform_0, window_bounds = array<i64: 16, 128>}, {transform_indices = @transform_1, window_bounds = array<i64: 8, 128>}, {pipeline_mode = #tpu.pipeline_mode<synchronous>, transform_indices = @transform_2, window_bounds = array<i64: 16, 8>}, {pipeline_mode = #tpu.pipeline_mode<synchronous>, transform_indices = @transform_3, window_bounds = array<i64: 128, 128>}, {pipeline_mode = #tpu.pipeline_mode<synchronous>, transform_indices = @transform_4, window_bounds = array<i64: 1, 128>}, {pipeline_mode = #tpu.pipeline_mode<synchronous>, transform_indices = @transform_5, window_bounds = array<i64: 128, 128>}, {pipeline_mode = #tpu.pipeline_mode<synchronous>, transform_indices = @transform_6, window_bounds = array<i64: 128, 128>}, {pipeline_mode = #tpu.pipeline_mode<synchronous>, transform_indices = @transform_7, window_bounds = array<i64: 3, 128, 128>}, {pipeline_mode = #tpu.pipeline_mode<synchronous>, transform_indices = @transform_8, window_bounds = array<i64: 128, 256>}, {pipeline_mode = #tpu.pipeline_mode<synchronous>, transform_indices = @transform_9, window_bounds = array<i64: 2, 128, 128>}, {pipeline_mode = #tpu.pipeline_mode<synchronous>, transform_indices = @transform_10, window_bounds = array<i64: 8, 128>}, {transform_indices = @transform_11, window_bounds = array<i64: 16, 128>}]} {
    %c0 = arith.constant 0 : index
    %c0_0 = arith.constant 0 : index
    %0 = vector.load %arg11[%c0, %c0_0] : memref<8x128xf32, #tpu.memory_space<vmem>>, vector<8x128xf32>
    %1 = vector.extract_strided_slice %0 {offsets = [0, 0], sizes = [1, 128], strides = [1, 1]} : vector<8x128xf32> to vector<1x128xf32>
    %2 = vector.extract_strided_slice %0 {offsets = [1, 0], sizes = [1, 128], strides = [1, 1]} : vector<8x128xf32> to vector<1x128xf32>
    %3 = vector.extract_strided_slice %0 {offsets = [2, 0], sizes = [1, 128], strides = [1, 1]} : vector<8x128xf32> to vector<1x128xf32>
    %4 = vector.extract_strided_slice %0 {offsets = [3, 0], sizes = [1, 128], strides = [1, 1]} : vector<8x128xf32> to vector<1x128xf32>
    %5 = vector.extract_strided_slice %0 {offsets = [4, 0], sizes = [1, 128], strides = [1, 1]} : vector<8x128xf32> to vector<1x128xf32>
    %6 = vector.extract_strided_slice %0 {offsets = [5, 0], sizes = [1, 128], strides = [1, 1]} : vector<8x128xf32> to vector<1x128xf32>
    %7 = vector.extract_strided_slice %0 {offsets = [6, 0], sizes = [1, 128], strides = [1, 1]} : vector<8x128xf32> to vector<1x128xf32>
    %c0_1 = arith.constant 0 : index
    %c0_2 = arith.constant 0 : index
    %8 = vector.load %arg2[%c0_1, %c0_2] : memref<8x128xf32, #tpu.memory_space<vmem>>, vector<8x128xf32>
    %c0_3 = arith.constant 0 : index
    %c0_4 = arith.constant 0 : index
    %9 = vector.load %arg4[%c0_3, %c0_4] : memref<128x128xf32, #tpu.memory_space<vmem>>, vector<128x128xf32>
    %cst = arith.constant dense<0.000000e+00> : vector<8x128xf32>
    %10 = tpu.matmul %8, %9, %cst {dimension_numbers = #tpu.dot_dimension_numbers<[1], [0], [0], [1], [0, 0, 1, 1], [], []>} : vector<8x128xf32>, vector<128x128xf32>, vector<8x128xf32> -> vector<8x128xf32>
    %c0_5 = arith.constant 0 : index
    %c0_6 = arith.constant 0 : index
    %11 = vector.load %arg5[%c0_5, %c0_6] : memref<1x128xf32, #tpu.memory_space<vmem>>, vector<1x128xf32>
    %12 = vector.broadcast %11 : vector<1x128xf32> to vector<8x128xf32>
    %13 = arith.addf %10, %12 : vector<8x128xf32>
    %cst_7 = arith.constant 2.000000e+01 : f32
    %14 = vector.broadcast %cst_7 : f32 to vector<8x128xf32>
    %15 = arith.cmpf ogt, %13, %14 : vector<8x128xf32>
    %cst_8 = arith.constant 2.000000e+01 : f32
    %16 = vector.broadcast %cst_8 : f32 to vector<8x128xf32>
    %17 = arith.minimumf %13, %16 : vector<8x128xf32>
    %18 = math.exp %17 : vector<8x128xf32>
    %19 = math.log1p %18 : vector<8x128xf32>
    %20 = arith.select %15, %13, %19 : vector<8x128xi1>, vector<8x128xf32>
    %c0_9 = arith.constant 0 : index
    %c0_10 = arith.constant 0 : index
    %21 = vector.load %arg6[%c0_9, %c0_10] : memref<128x128xf32, #tpu.memory_space<vmem>>, vector<128x128xf32>
    %cst_11 = arith.constant dense<0.000000e+00> : vector<8x128xf32>
    %22 = tpu.matmul %20, %21, %cst_11 {dimension_numbers = #tpu.dot_dimension_numbers<[1], [0], [0], [1], [0, 0, 1, 1], [], []>} : vector<8x128xf32>, vector<128x128xf32>, vector<8x128xf32> -> vector<8x128xf32>
    %23 = vector.broadcast %1 : vector<1x128xf32> to vector<8x128xf32>
    %24 = arith.addf %22, %23 : vector<8x128xf32>
    %cst_12 = arith.constant 2.000000e+01 : f32
    %25 = vector.broadcast %cst_12 : f32 to vector<8x128xf32>
    %26 = arith.cmpf ogt, %24, %25 : vector<8x128xf32>
    %cst_13 = arith.constant 2.000000e+01 : f32
    %27 = vector.broadcast %cst_13 : f32 to vector<8x128xf32>
    %28 = arith.minimumf %24, %27 : vector<8x128xf32>
    %29 = math.exp %28 : vector<8x128xf32>
    %30 = math.log1p %29 : vector<8x128xf32>
    %31 = arith.select %26, %24, %30 : vector<8x128xi1>, vector<8x128xf32>
    %c0_14 = arith.constant 0 : index
    %c0_15 = arith.constant 0 : index
    %32 = vector.load %arg7[%c0_14, %c0_15] : memref<128x128xf32, #tpu.memory_space<vmem>>, vector<128x128xf32>
    %cst_16 = arith.constant dense<0.000000e+00> : vector<8x128xf32>
    %33 = tpu.matmul %31, %32, %cst_16 {dimension_numbers = #tpu.dot_dimension_numbers<[1], [0], [0], [1], [0, 0, 1, 1], [], []>} : vector<8x128xf32>, vector<128x128xf32>, vector<8x128xf32> -> vector<8x128xf32>
    %34 = vector.broadcast %2 : vector<1x128xf32> to vector<8x128xf32>
    %35 = arith.addf %33, %34 : vector<8x128xf32>
    %cst_17 = arith.constant 0.000000e+00 : f32
    %36 = vector.broadcast %cst_17 : f32 to vector<8x128xf32>
    %37 = arith.subf %36, %35 : vector<8x128xf32>
    %38 = math.exp %37 : vector<8x128xf32>
    %cst_18 = arith.constant 1.000000e+00 : f32
    %39 = vector.broadcast %cst_18 : f32 to vector<8x128xf32>
    %40 = arith.addf %39, %38 : vector<8x128xf32>
    %41 = tpu.reciprocal %40 {approx = true} : vector<8x128xf32> -> vector<8x128xf32>
    %42 = arith.mulf %31, %41 : vector<8x128xf32>
    %c0_19 = arith.constant 0 : index
    %c0_20 = arith.constant 0 : index
    %43 = vector.load %arg3[%c0_19, %c0_20] : memref<16x8xf32, #tpu.memory_space<vmem>>, vector<16x8xf32>
    %cst_21 = arith.constant dense<0.000000e+00> : vector<16x128xf32>
    %44 = tpu.matmul %43, %31, %cst_21 {dimension_numbers = #tpu.dot_dimension_numbers<[1], [0], [0], [1], [0, 0, 1, 1], [], []>} : vector<16x8xf32>, vector<8x128xf32>, vector<16x128xf32> -> vector<16x128xf32>
    %cst_22 = arith.constant dense<0.000000e+00> : vector<16x128xf32>
    %45 = tpu.matmul %43, %42, %cst_22 {dimension_numbers = #tpu.dot_dimension_numbers<[1], [0], [0], [1], [0, 0, 1, 1], [], []>} : vector<16x8xf32>, vector<8x128xf32>, vector<16x128xf32> -> vector<16x128xf32>
    %c1 = arith.constant 1 : index
    %c0_23 = arith.constant 0 : index
    %c0_24 = arith.constant 0 : index
    %46 = vector.load %arg8[%c1, %c0_23, %c0_24] : memref<3x128x128xf32, #tpu.memory_space<vmem>>, vector<1x128x128xf32>
    %47 = vector.shape_cast %46 : vector<1x128x128xf32> to vector<128x128xf32>
    %cst_25 = arith.constant dense<0.000000e+00> : vector<16x128xf32>
    %48 = tpu.matmul %45, %47, %cst_25 {dimension_numbers = #tpu.dot_dimension_numbers<[1], [0], [0], [1], [0, 0, 1, 1], [], []>} : vector<16x128xf32>, vector<128x128xf32>, vector<16x128xf32> -> vector<16x128xf32>
    %cst_26 = arith.constant 0.000000e+00 : f32
    %49 = vector.broadcast %cst_26 : f32 to vector<1x128xf32>
    %50 = vector.extract_strided_slice %45 {offsets = [0, 0], sizes = [15, 128], strides = [1, 1]} : vector<16x128xf32> to vector<15x128xf32>
    %51 = tpu.concatenate %49, %50 in 0 : vector<1x128xf32>, vector<15x128xf32> -> vector<16x128xf32>
    %c0_27 = arith.constant 0 : index
    %c0_28 = arith.constant 0 : index
    %c0_29 = arith.constant 0 : index
    %52 = vector.load %arg8[%c0_27, %c0_28, %c0_29] : memref<3x128x128xf32, #tpu.memory_space<vmem>>, vector<1x128x128xf32>
    %53 = vector.shape_cast %52 : vector<1x128x128xf32> to vector<128x128xf32>
    %cst_30 = arith.constant dense<0.000000e+00> : vector<16x128xf32>
    %54 = tpu.matmul %51, %53, %cst_30 {dimension_numbers = #tpu.dot_dimension_numbers<[1], [0], [0], [1], [0, 0, 1, 1], [], []>} : vector<16x128xf32>, vector<128x128xf32>, vector<16x128xf32> -> vector<16x128xf32>
    %55 = arith.addf %48, %54 : vector<16x128xf32>
    %cst_31 = arith.constant 0.000000e+00 : f32
    %56 = vector.broadcast %cst_31 : f32 to vector<1x128xf32>
    %57 = vector.extract_strided_slice %45 {offsets = [1, 0], sizes = [15, 128], strides = [1, 1]} : vector<16x128xf32> to vector<15x128xf32>
    %58 = tpu.concatenate %57, %56 in 0 : vector<15x128xf32>, vector<1x128xf32> -> vector<16x128xf32>
    %c2 = arith.constant 2 : index
    %c0_32 = arith.constant 0 : index
    %c0_33 = arith.constant 0 : index
    %59 = vector.load %arg8[%c2, %c0_32, %c0_33] : memref<3x128x128xf32, #tpu.memory_space<vmem>>, vector<1x128x128xf32>
    %60 = vector.shape_cast %59 : vector<1x128x128xf32> to vector<128x128xf32>
    %cst_34 = arith.constant dense<0.000000e+00> : vector<16x128xf32>
    %61 = tpu.matmul %58, %60, %cst_34 {dimension_numbers = #tpu.dot_dimension_numbers<[1], [0], [0], [1], [0, 0, 1, 1], [], []>} : vector<16x128xf32>, vector<128x128xf32>, vector<16x128xf32> -> vector<16x128xf32>
    %62 = arith.addf %55, %61 : vector<16x128xf32>
    %63 = vector.broadcast %4 : vector<1x128xf32> to vector<16x128xf32>
    %64 = arith.mulf %63, %44 : vector<16x128xf32>
    %65 = vector.broadcast %5 : vector<1x128xf32> to vector<16x128xf32>
    %66 = arith.addf %64, %65 : vector<16x128xf32>
    %67 = arith.mulf %62, %66 : vector<16x128xf32>
    %cst_35 = arith.constant 2.000000e+01 : f32
    %68 = vector.broadcast %cst_35 : f32 to vector<16x128xf32>
    %69 = arith.cmpf ogt, %67, %68 : vector<16x128xf32>
    %cst_36 = arith.constant 2.000000e+01 : f32
    %70 = vector.broadcast %cst_36 : f32 to vector<16x128xf32>
    %71 = arith.minimumf %67, %70 : vector<16x128xf32>
    %72 = math.exp %71 : vector<16x128xf32>
    %73 = math.log1p %72 : vector<16x128xf32>
    %74 = arith.select %69, %67, %73 : vector<16x128xi1>, vector<16x128xf32>
    %c0_37 = arith.constant 0 : index
    %c0_38 = arith.constant 0 : index
    %75 = vector.load %arg1[%c0_37, %c0_38] : memref<16x128xf32, #tpu.memory_space<vmem>>, vector<16x128xf32>
    %76 = arith.subf %75, %74 : vector<16x128xf32>
    %cst_39 = arith.constant 2.000000e+01 : f32
    %77 = vector.broadcast %cst_39 : f32 to vector<16x128xf32>
    %78 = arith.cmpf ogt, %76, %77 : vector<16x128xf32>
    %cst_40 = arith.constant 2.000000e+01 : f32
    %79 = vector.broadcast %cst_40 : f32 to vector<16x128xf32>
    %80 = arith.minimumf %76, %79 : vector<16x128xf32>
    %81 = math.exp %80 : vector<16x128xf32>
    %82 = math.log1p %81 : vector<16x128xf32>
    %83 = arith.select %78, %76, %82 : vector<16x128xi1>, vector<16x128xf32>
    %c0_41 = arith.constant 0 : index
    %c0_42 = arith.constant 0 : index
    %84 = vector.load %arg9[%c0_41, %c0_42] : memref<128x256xf32, #tpu.memory_space<vmem>>, vector<128x256xf32>
    %cst_43 = arith.constant dense<0.000000e+00> : vector<16x256xf32>
    %85 = tpu.matmul %83, %84, %cst_43 {dimension_numbers = #tpu.dot_dimension_numbers<[1], [0], [0], [1], [0, 0, 1, 1], [], []>} : vector<16x128xf32>, vector<128x256xf32>, vector<16x256xf32> -> vector<16x256xf32>
    %86 = vector.extract_strided_slice %85 {offsets = [0, 0], sizes = [16, 128], strides = [1, 1]} : vector<16x256xf32> to vector<16x128xf32>
    %87 = vector.extract_strided_slice %85 {offsets = [0, 128], sizes = [16, 128], strides = [1, 1]} : vector<16x256xf32> to vector<16x128xf32>
    %88 = vector.broadcast %3 : vector<1x128xf32> to vector<16x128xf32>
    %89 = arith.addf %87, %88 : vector<16x128xf32>
    %cst_44 = arith.constant 0.000000e+00 : f32
    %90 = vector.broadcast %cst_44 : f32 to vector<16x128xf32>
    %91 = arith.subf %90, %89 : vector<16x128xf32>
    %92 = math.exp %91 : vector<16x128xf32>
    %cst_45 = arith.constant 1.000000e+00 : f32
    %93 = vector.broadcast %cst_45 : f32 to vector<16x128xf32>
    %94 = arith.addf %93, %92 : vector<16x128xf32>
    %95 = tpu.reciprocal %94 {approx = true} : vector<16x128xf32> -> vector<16x128xf32>
    %cst_46 = arith.constant 0.000000e+00 : f32
    %96 = vector.broadcast %cst_46 : f32 to vector<1x128xf32>
    %97 = vector.extract_strided_slice %83 {offsets = [0, 0], sizes = [15, 128], strides = [1, 1]} : vector<16x128xf32> to vector<15x128xf32>
    %98 = tpu.concatenate %96, %97 in 0 : vector<1x128xf32>, vector<15x128xf32> -> vector<16x128xf32>
    %c0_47 = arith.constant 0 : index
    %c0_48 = arith.constant 0 : index
    %c0_49 = arith.constant 0 : index
    %99 = vector.load %arg10[%c0_47, %c0_48, %c0_49] : memref<2x128x128xf32, #tpu.memory_space<vmem>>, vector<1x128x128xf32>
    %100 = vector.shape_cast %99 : vector<1x128x128xf32> to vector<128x128xf32>
    %cst_50 = arith.constant dense<0.000000e+00> : vector<16x128xf32>
    %101 = tpu.matmul %98, %100, %cst_50 {dimension_numbers = #tpu.dot_dimension_numbers<[1], [0], [0], [1], [0, 0, 1, 1], [], []>} : vector<16x128xf32>, vector<128x128xf32>, vector<16x128xf32> -> vector<16x128xf32>
    %102 = arith.addf %86, %101 : vector<16x128xf32>
    %cst_51 = arith.constant 0.000000e+00 : f32
    %103 = vector.broadcast %cst_51 : f32 to vector<1x128xf32>
    %104 = vector.extract_strided_slice %83 {offsets = [1, 0], sizes = [15, 128], strides = [1, 1]} : vector<16x128xf32> to vector<15x128xf32>
    %105 = tpu.concatenate %104, %103 in 0 : vector<15x128xf32>, vector<1x128xf32> -> vector<16x128xf32>
    %c1_52 = arith.constant 1 : index
    %c0_53 = arith.constant 0 : index
    %c0_54 = arith.constant 0 : index
    %106 = vector.load %arg10[%c1_52, %c0_53, %c0_54] : memref<2x128x128xf32, #tpu.memory_space<vmem>>, vector<1x128x128xf32>
    %107 = vector.shape_cast %106 : vector<1x128x128xf32> to vector<128x128xf32>
    %cst_55 = arith.constant dense<0.000000e+00> : vector<16x128xf32>
    %108 = tpu.matmul %105, %107, %cst_55 {dimension_numbers = #tpu.dot_dimension_numbers<[1], [0], [0], [1], [0, 0, 1, 1], [], []>} : vector<16x128xf32>, vector<128x128xf32>, vector<16x128xf32> -> vector<16x128xf32>
    %109 = arith.addf %102, %108 : vector<16x128xf32>
    %110 = arith.addf %83, %109 : vector<16x128xf32>
    %111 = vector.broadcast %7 : vector<1x128xf32> to vector<16x128xf32>
    %112 = arith.mulf %111, %110 : vector<16x128xf32>
    %113 = vector.broadcast %6 : vector<1x128xf32> to vector<16x128xf32>
    %114 = arith.mulf %113, %83 : vector<16x128xf32>
    %115 = arith.mulf %114, %109 : vector<16x128xf32>
    %116 = arith.addf %112, %115 : vector<16x128xf32>
    %cst_56 = arith.constant 2.000000e+01 : f32
    %117 = vector.broadcast %cst_56 : f32 to vector<16x128xf32>
    %118 = arith.cmpf ogt, %116, %117 : vector<16x128xf32>
    %cst_57 = arith.constant 2.000000e+01 : f32
    %119 = vector.broadcast %cst_57 : f32 to vector<16x128xf32>
    %120 = arith.minimumf %116, %119 : vector<16x128xf32>
    %121 = math.exp %120 : vector<16x128xf32>
    %122 = math.log1p %121 : vector<16x128xf32>
    %123 = arith.select %118, %116, %122 : vector<16x128xi1>, vector<16x128xf32>
    %cst_58 = arith.constant 1.000000e+00 : f32
    %124 = vector.broadcast %cst_58 : f32 to vector<16x128xf32>
    %125 = arith.subf %124, %95 : vector<16x128xf32>
    %126 = arith.mulf %125, %75 : vector<16x128xf32>
    %127 = arith.mulf %95, %123 : vector<16x128xf32>
    %128 = arith.addf %126, %127 : vector<16x128xf32>
    %c0_59 = arith.constant 0 : index
    %c0_60 = arith.constant 0 : index
    %129 = vector.load %arg12[%c0_59, %c0_60] : memref<16x128xf32, #tpu.memory_space<vmem>>, vector<16x128xf32>
    tpu.vector_store %arg12[%c0_59, %c0_60], %128 {strides = array<i32>} : memref<16x128xf32, #tpu.memory_space<vmem>>, vector<16x128xf32>,
    return
  }
  func.func @transform_0(%arg0: i32) -> (i32, i32) {
    %c0_i32 = arith.constant 0 : i32
    %c0_i32_0 = arith.constant 0 : i32
    return %arg0, %c0_i32 : i32, i32
  }
  func.func @transform_1(%arg0: i32) -> (i32, i32) {
    %c0_i32 = arith.constant 0 : i32
    %c0_i32_0 = arith.constant 0 : i32
    return %arg0, %c0_i32 : i32, i32
  }
  func.func @transform_2(%arg0: i32) -> (i32, i32) {
    %c0_i32 = arith.constant 0 : i32
    %c0_i32_0 = arith.constant 0 : i32
    %c0_i32_1 = arith.constant 0 : i32
    return %c0_i32, %c0_i32_0 : i32, i32
  }
  func.func @transform_3(%arg0: i32) -> (i32, i32) {
    %c0_i32 = arith.constant 0 : i32
    %c0_i32_0 = arith.constant 0 : i32
    %c0_i32_1 = arith.constant 0 : i32
    return %c0_i32, %c0_i32_0 : i32, i32
  }
  func.func @transform_4(%arg0: i32) -> (i32, i32) {
    %c0_i32 = arith.constant 0 : i32
    %c0_i32_0 = arith.constant 0 : i32
    %c0_i32_1 = arith.constant 0 : i32
    return %c0_i32, %c0_i32_0 : i32, i32
  }
  func.func @transform_5(%arg0: i32) -> (i32, i32) {
    %c0_i32 = arith.constant 0 : i32
    %c0_i32_0 = arith.constant 0 : i32
    %c0_i32_1 = arith.constant 0 : i32
    return %c0_i32, %c0_i32_0 : i32, i32
  }
  func.func @transform_6(%arg0: i32) -> (i32, i32) {
    %c0_i32 = arith.constant 0 : i32
    %c0_i32_0 = arith.constant 0 : i32
    %c0_i32_1 = arith.constant 0 : i32
    return %c0_i32, %c0_i32_0 : i32, i32
  }
  func.func @transform_7(%arg0: i32) -> (i32, i32, i32) {
    %c0_i32 = arith.constant 0 : i32
    %c0_i32_0 = arith.constant 0 : i32
    %c0_i32_1 = arith.constant 0 : i32
    %c0_i32_2 = arith.constant 0 : i32
    return %c0_i32, %c0_i32_0, %c0_i32_1 : i32, i32, i32
  }
  func.func @transform_8(%arg0: i32) -> (i32, i32) {
    %c0_i32 = arith.constant 0 : i32
    %c0_i32_0 = arith.constant 0 : i32
    %c0_i32_1 = arith.constant 0 : i32
    return %c0_i32, %c0_i32_0 : i32, i32
  }
  func.func @transform_9(%arg0: i32) -> (i32, i32, i32) {
    %c0_i32 = arith.constant 0 : i32
    %c0_i32_0 = arith.constant 0 : i32
    %c0_i32_1 = arith.constant 0 : i32
    %c0_i32_2 = arith.constant 0 : i32
    return %c0_i32, %c0_i32_0, %c0_i32_1 : i32, i32, i32
  }
  func.func @transform_10(%arg0: i32) -> (i32, i32) {
    %c0_i32 = arith.constant 0 : i32
    %c0_i32_0 = arith.constant 0 : i32
    %c0_i32_1 = arith.constant 0 : i32
    return %c0_i32, %c0_i32_0 : i32, i32
  }
  func.func @transform_11(%arg0: i32) -> (i32, i32) {
    %c0_i32 = arith.constant 0 : i32
    %c0_i32_0 = arith.constant 0 : i32
    return %arg0, %c0_i32 : i32, i32
  }
}

</mosaic_0001>

<llo_original>
// kernel: tpu_custom_call.1
$region0: #{tpu_custom_call.1}
  #allocation0 [shape = 'u32[]', space=smem, size = 0x4, offset = 0x4, fixed_abs, tag = 'smem constant byte address 0x4 - core index']
  #allocation1 [shape = 'u32[144,128]{1,0:T(1,128)}', space=vmem, size = 0x12000, scoped, tag = 'internal scratch']
  %s0 = inlined_call_operand.hbm [shape: f32[32,128], index: 0, kind: input, shape index: {}]
  %s1 = inlined_call_operand.vmem [shape: f32[16,128], index: 1, kind: input, shape index: {}]
  %s2 = inlined_call_operand.vmem [shape: f32[16,8], index: 2, kind: input, shape index: {}]
  %s3 = inlined_call_operand.hbm [shape: f32[128,128], index: 3, kind: input, shape index: {}]
  %s4 = inlined_call_operand.vmem [shape: f32[1,128], index: 4, kind: input, shape index: {}]
  %s5 = inlined_call_operand.hbm [shape: f32[128,128], index: 5, kind: input, shape index: {}]
  %s6 = inlined_call_operand.hbm [shape: f32[128,128], index: 6, kind: input, shape index: {}]
  %s7 = inlined_call_operand.hbm [shape: f32[3,128,128], index: 7, kind: input, shape index: {}]
  %s8 = inlined_call_operand.hbm [shape: f32[128,256], index: 8, kind: input, shape index: {}]
  %s9 = inlined_call_operand.hbm [shape: f32[2,128,128], index: 9, kind: input, shape index: {}]
  %s10 = inlined_call_operand.vmem [shape: f32[8,128], index: 10, kind: input, shape index: {}]
  %s11 = inlined_call_operand.hbm [shape: f32[32,128], index: 11, kind: output, shape index: {}]
  %s12 = sld [smem:[#allocation0]]
  $region105: #{tpu_custom_call.1} parent=0
    _
  %s14 = ssub.s32 1, %s12
  %s15 = scalar_select 0, %s14, %s12
  $region1: #{tpu_custom_call.1} parent=0
    #allocation2 [shape = 'u8[16384]{0}', space=vmem, size = 0x4000, scoped, tag = 'input window, operand 0']
    #allocation3 [shape = 's32[2]{0}', space=sflag, size = 0x8, scoped, tag = 'scoped memory for tpu_custom_call.1']
    #allocation4 [shape = 's32[2]{0}', space=sflag, size = 0x8, scoped, tag = 'scoped memory for tpu_custom_call.1']
    #allocation5 [shape = 'u8[65536]{0}', space=vmem, size = 0x10000, scoped, tag = 'input window, operand 3, single buffered']
    #allocation6 [shape = 's32[1]{0}', space=sflag, size = 0x4, scoped, tag = 'scoped memory for tpu_custom_call.1']
    #allocation7 [shape = 'u8[65536]{0}', space=vmem, size = 0x10000, scoped, tag = 'input window, operand 5, single buffered']
    #allocation8 [shape = 'u8[65536]{0}', space=vmem, size = 0x10000, scoped, tag = 'input window, operand 6, single buffered']
    #allocation9 [shape = 's32[1]{0}', space=sflag, size = 0x4, scoped, tag = 'scoped memory for tpu_custom_call.1']
    #allocation10 [shape = 'u8[196608]{0}', space=vmem, size = 0x30000, scoped, tag = 'input window, operand 7, single buffered']
    #allocation11 [shape = 'u8[131072]{0}', space=vmem, size = 0x20000, scoped, tag = 'input window, operand 8, single buffered']
    #allocation12 [shape = 's32[1]{0}', space=sflag, size = 0x4, scoped, tag = 'scoped memory for tpu_custom_call.1']
    #allocation13 [shape = 'u8[131072]{0}', space=vmem, size = 0x20000, scoped, tag = 'input window, operand 9, single buffered']
    #allocation14 [shape = 'u8[16384]{0}', space=vmem, size = 0x4000, scoped, tag = 'output window, operand 0']
    %16 = vsyncpa [#allocation3], 0
    %s17 = scalar_lea.sflag [#allocation3], 1
    %18 = vsyncpa %s17, 0
    %19 = vsyncpa [#allocation6], 0
    %20 = vsyncpa [#allocation9], 0
    %21 = vsyncpa [#allocation12], 0
    %22 = vsyncpa [#allocation4], 0
    %s23 = scalar_lea.sflag [#allocation4], 1
    %24 = vsyncpa %s23, 0
    loop: start=0, step=1, limit=4
    $region2: #{tpu_custom_call.1} parent=1 // loop_pre_header
      _
    $region3: #{tpu_custom_call.1} parent=1 // loop_header
      %s26 = sphi 0, %s30
      %p27 = scmp.ge.s32.totalorder %s26, 4
      %s36 = sphi 0, %s38
      %s39 = sphi 0, %s36
      %s40 = sphi 0, %s39
      %s56 = sphi 0, %s40
      %s62 = sphi 0, %s64
      %s65 = sphi 0, %s62
      %s66 = sphi 0, %s65
      %s82 = sphi 0, %s66
      %s86 = sphi 0, %s86
      %s88 = sphi 0, %s86
      %s89 = sphi 0, %s88
      %s103 = sphi 0, %s89
      %s107 = sphi 0, %s107
      %s109 = sphi 0, %s107
      %s110 = sphi 0, %s109
      %s124 = sphi 0, %s110
      %s128 = sphi 0, %s128
      %s130 = sphi 0, %s128
      %s131 = sphi 0, %s130
      %s145 = sphi 0, %s131
      %s149 = sphi 0, %s149
      %s151 = sphi 0, %s149
      %s152 = sphi 0, %s151
      %s166 = sphi 0, %s152
      %s170 = sphi 0, %s170
      %s172 = sphi 0, %s170
      %s173 = sphi 0, %s172
      %s187 = sphi 0, %s173
      %s191 = sphi 0, %s191
      %s193 = sphi 0, %s191
      %s194 = sphi 0, %s193
      %s208 = sphi 0, %s194
      %s212 = sphi 0, %s212
      %s214 = sphi 0, %s212
      %s215 = sphi 0, %s214
      %s229 = sphi 0, %s215
      %s233 = sphi 0, %s233
      %s235 = sphi 0, %s233
      %s236 = sphi 0, %s235
      %s250 = sphi 0, %s236
      %s254 = sphi 0, %s254
      %s256 = sphi 0, %s254
      %s257 = sphi 0, %s256
      %s271 = sphi 0, %s257
      %s277 = sphi 0, %s279
      %s280 = sphi 0, %s277
      %s281 = sphi 0, %s280
      %s297 = sphi 0, %s281
    $region4: #{tpu_custom_call.1} parent=1 // loop_header_branch
      %29 = sbr.rel (%p27) target = $region8
    $region5: #{tpu_custom_call.1} parent=1 // loop_body
      %s31 = ssub.s32 %s26, 1
      %s32 = ssub.s32 %s26, 2
      %s33 = sadd.s32 %s26, 1
      %s34 = ssub.s32 %s26, %s33
      %p35 = scmp.eq.s32.totalorder %s34, 0
      %s37 = sadd.s32 %s36, 1
      %s38 = scalar_select %p35, %s36, %s37
      %p41 = pneg %p35
      %p42 = scmp.eq.s32.totalorder %s26, 1
      %p43 = por %p41, %p42
      %p44 = scmp.ne.s32.totalorder %s36, %s39
      %p45 = scmp.eq.s32.totalorder %s26, 0
      %p46 = por %p44, %p45
      %p47 = scmp.ne.s32.totalorder %s36, %s39
      %p48 = scmp.eq.s32.totalorder %s31, 1
      %p49 = por %p47, %p48
      %p50 = scmp.ne.s32.totalorder %s39, %s40
      %p51 = scmp.eq.s32.totalorder %s31, 0
      %p52 = por %p50, %p51
      %p53 = scmp.ne.s32.totalorder %s39, %s40
      %p54 = scmp.eq.s32.totalorder %s32, 1
      %p55 = por %p53, %p54
      %p57 = scmp.ne.s32.totalorder %s40, %s56
      %p58 = scmp.eq.s32.totalorder %s32, 0
      %p59 = por %p57, %p58
      %s60 = ssub.s32 %s26, %s33
      %p61 = scmp.eq.s32.totalorder %s60, 0
      %s63 = sadd.s32 %s62, 1
      %s64 = scalar_select %p61, %s62, %s63
      %p67 = pneg %p61
      %p68 = scmp.eq.s32.totalorder %s26, 1
      %p69 = por %p67, %p68
      %p70 = scmp.ne.s32.totalorder %s62, %s65
      %p71 = scmp.eq.s32.totalorder %s26, 0
      %p72 = por %p70, %p71
      %p73 = scmp.ne.s32.totalorder %s62, %s65
      %p74 = scmp.eq.s32.totalorder %s31, 1
      %p75 = por %p73, %p74
      %p76 = scmp.ne.s32.totalorder %s65, %s66
      %p77 = scmp.eq.s32.totalorder %s31, 0
      %p78 = por %p76, %p77
      %p79 = scmp.ne.s32.totalorder %s65, %s66
      %p80 = scmp.eq.s32.totalorder %s32, 1
      %p81 = por %p79, %p80
      %p83 = scmp.ne.s32.totalorder %s66, %s82
      %p84 = scmp.eq.s32.totalorder %s32, 0
      %p85 = por %p83, %p84
      %s87 = sadd.s32 %s86, 1
      %p90 = scmp.eq.s32.totalorder %s26, 1
      %p91 = scmp.ne.s32.totalorder %s86, %s88
      %p92 = scmp.eq.s32.totalorder %s26, 0
      %p93 = por %p91, %p92
      %p94 = scmp.ne.s32.totalorder %s86, %s88
      %p95 = scmp.eq.s32.totalorder %s31, 1
      %p96 = por %p94, %p95
      %p97 = scmp.ne.s32.totalorder %s88, %s89
      %p98 = scmp.eq.s32.totalorder %s31, 0
      %p99 = por %p97, %p98
      %p100 = scmp.ne.s32.totalorder %s88, %s89
      %p101 = scmp.eq.s32.totalorder %s32, 1
      %p102 = por %p100, %p101
      %p104 = scmp.ne.s32.totalorder %s89, %s103
      %p105 = scmp.eq.s32.totalorder %s32, 0
      %p106 = por %p104, %p105
      %s108 = sadd.s32 %s107, 1
      %p111 = scmp.eq.s32.totalorder %s26, 1
      %p112 = scmp.ne.s32.totalorder %s107, %s109
      %p113 = scmp.eq.s32.totalorder %s26, 0
      %p114 = por %p112, %p113
      %p115 = scmp.ne.s32.totalorder %s107, %s109
      %p116 = scmp.eq.s32.totalorder %s31, 1
      %p117 = por %p115, %p116
      %p118 = scmp.ne.s32.totalorder %s109, %s110
      %p119 = scmp.eq.s32.totalorder %s31, 0
      %p120 = por %p118, %p119
      %p121 = scmp.ne.s32.totalorder %s109, %s110
      %p122 = scmp.eq.s32.totalorder %s32, 1
      %p123 = por %p121, %p122
      %p125 = scmp.ne.s32.totalorder %s110, %s124
      %p126 = scmp.eq.s32.totalorder %s32, 0
      %p127 = por %p125, %p126
      %s129 = sadd.s32 %s128, 1
      %p132 = scmp.eq.s32.totalorder %s26, 1
      %p133 = scmp.ne.s32.totalorder %s128, %s130
      %p134 = scmp.eq.s32.totalorder %s26, 0
      %p135 = por %p133, %p134
      %p136 = scmp.ne.s32.totalorder %s128, %s130
      %p137 = scmp.eq.s32.totalorder %s31, 1
      %p138 = por %p136, %p137
      %p139 = scmp.ne.s32.totalorder %s130, %s131
      %p140 = scmp.eq.s32.totalorder %s31, 0
      %p141 = por %p139, %p140
      %p142 = scmp.ne.s32.totalorder %s130, %s131
      %p143 = scmp.eq.s32.totalorder %s32, 1
      %p144 = por %p142, %p143
      %p146 = scmp.ne.s32.totalorder %s131, %s145
      %p147 = scmp.eq.s32.totalorder %s32, 0
      %p148 = por %p146, %p147
      %s150 = sadd.s32 %s149, 1
      %p153 = scmp.eq.s32.totalorder %s26, 1
      %p154 = scmp.ne.s32.totalorder %s149, %s151
      %p155 = scmp.eq.s32.totalorder %s26, 0
      %p156 = por %p154, %p155
      %p157 = scmp.ne.s32.totalorder %s149, %s151
      %p158 = scmp.eq.s32.totalorder %s31, 1
      %p159 = por %p157, %p158
      %p160 = scmp.ne.s32.totalorder %s151, %s152
      %p161 = scmp.eq.s32.totalorder %s31, 0
      %p162 = por %p160, %p161
      %p163 = scmp.ne.s32.totalorder %s151, %s152
      %p164 = scmp.eq.s32.totalorder %s32, 1
      %p165 = por %p163, %p164
      %p167 = scmp.ne.s32.totalorder %s152, %s166
      %p168 = scmp.eq.s32.totalorder %s32, 0
      %p169 = por %p167, %p168
      %s171 = sadd.s32 %s170, 1
      %p174 = scmp.eq.s32.totalorder %s26, 1
      %p175 = scmp.ne.s32.totalorder %s170, %s172
      %p176 = scmp.eq.s32.totalorder %s26, 0
      %p177 = por %p175, %p176
      %p178 = scmp.ne.s32.totalorder %s170, %s172
      %p179 = scmp.eq.s32.totalorder %s31, 1
      %p180 = por %p178, %p179
      %p181 = scmp.ne.s32.totalorder %s172, %s173
      %p182 = scmp.eq.s32.totalorder %s31, 0
      %p183 = por %p181, %p182
      %p184 = scmp.ne.s32.totalorder %s172, %s173
      %p185 = scmp.eq.s32.totalorder %s32, 1
      %p186 = por %p184, %p185
      %p188 = scmp.ne.s32.totalorder %s173, %s187
      %p189 = scmp.eq.s32.totalorder %s32, 0
      %p190 = por %p188, %p189
      %s192 = sadd.s32 %s191, 1
      %p195 = scmp.eq.s32.totalorder %s26, 1
      %p196 = scmp.ne.s32.totalorder %s191, %s193
      %p197 = scmp.eq.s32.totalorder %s26, 0
      %p198 = por %p196, %p197
      %p199 = scmp.ne.s32.totalorder %s191, %s193
      %p200 = scmp.eq.s32.totalorder %s31, 1
      %p201 = por %p199, %p200
      %p202 = scmp.ne.s32.totalorder %s193, %s194
      %p203 = scmp.eq.s32.totalorder %s31, 0
      %p204 = por %p202, %p203
      %p205 = scmp.ne.s32.totalorder %s193, %s194
      %p206 = scmp.eq.s32.totalorder %s32, 1
      %p207 = por %p205, %p206
      %p209 = scmp.ne.s32.totalorder %s194, %s208
      %p210 = scmp.eq.s32.totalorder %s32, 0
      %p211 = por %p209, %p210
      %s213 = sadd.s32 %s212, 1
      %p216 = scmp.eq.s32.totalorder %s26, 1
      %p217 = scmp.ne.s32.totalorder %s212, %s214
      %p218 = scmp.eq.s32.totalorder %s26, 0
      %p219 = por %p217, %p218
      %p220 = scmp.ne.s32.totalorder %s212, %s214
      %p221 = scmp.eq.s32.totalorder %s31, 1
      %p222 = por %p220, %p221
      %p223 = scmp.ne.s32.totalorder %s214, %s215
      %p224 = scmp.eq.s32.totalorder %s31, 0
      %p225 = por %p223, %p224
      %p226 = scmp.ne.s32.totalorder %s214, %s215
      %p227 = scmp.eq.s32.totalorder %s32, 1
      %p228 = por %p226, %p227
      %p230 = scmp.ne.s32.totalorder %s215, %s229
      %p231 = scmp.eq.s32.totalorder %s32, 0
      %p232 = por %p230, %p231
      %s234 = sadd.s32 %s233, 1
      %p237 = scmp.eq.s32.totalorder %s26, 1
      %p238 = scmp.ne.s32.totalorder %s233, %s235
      %p239 = scmp.eq.s32.totalorder %s26, 0
      %p240 = por %p238, %p239
      %p241 = scmp.ne.s32.totalorder %s233, %s235
      %p242 = scmp.eq.s32.totalorder %s31, 1
      %p243 = por %p241, %p242
      %p244 = scmp.ne.s32.totalorder %s235, %s236
      %p245 = scmp.eq.s32.totalorder %s31, 0
      %p246 = por %p244, %p245
      %p247 = scmp.ne.s32.totalorder %s235, %s236
      %p248 = scmp.eq.s32.totalorder %s32, 1
      %p249 = por %p247, %p248
      %p251 = scmp.ne.s32.totalorder %s236, %s250
      %p252 = scmp.eq.s32.totalorder %s32, 0
      %p253 = por %p251, %p252
      %s255 = sadd.s32 %s254, 1
      %p258 = scmp.eq.s32.totalorder %s26, 1
      %p259 = scmp.ne.s32.totalorder %s254, %s256
      %p260 = scmp.eq.s32.totalorder %s26, 0
      %p261 = por %p259, %p260
      %p262 = scmp.ne.s32.totalorder %s254, %s256
      %p263 = scmp.eq.s32.totalorder %s31, 1
      %p264 = por %p262, %p263
      %p265 = scmp.ne.s32.totalorder %s256, %s257
      %p266 = scmp.eq.s32.totalorder %s31, 0
      %p267 = por %p265, %p266
      %p268 = scmp.ne.s32.totalorder %s256, %s257
      %p269 = scmp.eq.s32.totalorder %s32, 1
      %p270 = por %p268, %p269
      %p272 = scmp.ne.s32.totalorder %s257, %s271
      %p273 = scmp.eq.s32.totalorder %s32, 0
      %p274 = por %p272, %p273
      %s275 = ssub.s32 %s26, %s33
      %p276 = scmp.eq.s32.totalorder %s275, 0
      %s278 = sadd.s32 %s277, 1
      %s279 = scalar_select %p276, %s277, %s278
      %p282 = pneg %p276
      %p283 = scmp.eq.s32.totalorder %s26, 1
      %p284 = por %p282, %p283
      %p285 = scmp.ne.s32.totalorder %s277, %s280
      %p286 = scmp.eq.s32.totalorder %s26, 0
      %p287 = por %p285, %p286
      %p288 = scmp.ne.s32.totalorder %s277, %s280
      %p289 = scmp.eq.s32.totalorder %s31, 1
      %p290 = por %p288, %p289
      %p291 = scmp.ne.s32.totalorder %s280, %s281
      %p292 = scmp.eq.s32.totalorder %s31, 0
      %p293 = por %p291, %p292
      %p294 = scmp.ne.s32.totalorder %s280, %s281
      %p295 = scmp.eq.s32.totalorder %s32, 1
      %p296 = por %p294, %p295
      %p298 = scmp.ne.s32.totalorder %s281, %s297
      %p299 = scmp.eq.s32.totalorder %s32, 0
      %p300 = por %p298, %p299
      %p301 = scmp.le.s32.totalorder 1, %s26
      %p302 = scmp.lt.s32.totalorder %s26, 3
      %p303 = pnand %p301, %p302
      %p304 = pneg %p303
      // Predicated region
      $region9: #{tpu_custom_call.1} parent=5 // pred_check
        _
      $region10: #{tpu_custom_call.1} parent=5 // pred_check_branch
        %306 = sbr.rel (%p303) target = $region12
      $region11: #{tpu_custom_call.1} parent=5 // pred_region
        %s307 = ssub.s32 %s26, 1
        // Predicated region
        $region13: #{tpu_custom_call.1} parent=11 // pred_check
          %p308 = pneg %p99
        $region14: #{tpu_custom_call.1} parent=11 // pred_check_branch
          %310 = sbr.rel (%p308) target = $region16
        $region15: #{tpu_custom_call.1} parent=11 // pred_region
          _
        $region16: #{tpu_custom_call.1} parent=11 // pred_fallthru
          _
        // Predicated region
        $region17: #{tpu_custom_call.1} parent=11 // pred_check
          %p311 = pneg %p120
        $region18: #{tpu_custom_call.1} parent=11 // pred_check_branch
          %313 = sbr.rel (%p311) target = $region20
        $region19: #{tpu_custom_call.1} parent=11 // pred_region
          %s315 = ssub.s32 2048, 2048
          %316 = vsyncadd [#allocation6], %s315
          %s317 = sshll.u32 [#allocation5], 4
          %s318 = int_to_ptr.vmem [resolvable:$true] %s317
          %323 = dma.hbm_to_vmem [thread:$0]  %s3, 2048, %s318, [#allocation6], 128, 128, 8
        $region20: #{tpu_custom_call.1} parent=11 // pred_fallthru
          _
        // Predicated region
        $region21: #{tpu_custom_call.1} parent=11 // pred_check
          %p324 = pneg %p141
        $region22: #{tpu_custom_call.1} parent=11 // pred_check_branch
          %326 = sbr.rel (%p324) target = $region24
        $region23: #{tpu_custom_call.1} parent=11 // pred_region
          _
        $region24: #{tpu_custom_call.1} parent=11 // pred_fallthru
          _
        // Predicated region
        $region25: #{tpu_custom_call.1} parent=11 // pred_check
          %p327 = pneg %p162
        $region26: #{tpu_custom_call.1} parent=11 // pred_check_branch
          %329 = sbr.rel (%p327) target = $region28
        $region27: #{tpu_custom_call.1} parent=11 // pred_region
          %s331 = ssub.s32 2048, 2048
          %332 = vsyncadd [#allocation6], %s331
          %s333 = sshll.u32 [#allocation7], 4
          %s334 = int_to_ptr.vmem [resolvable:$true] %s333
          %339 = dma.hbm_to_vmem [thread:$0]  %s5, 2048, %s334, [#allocation6], 128, 128, 8
        $region28: #{tpu_custom_call.1} parent=11 // pred_fallthru
          _
        // Predicated region
        $region29: #{tpu_custom_call.1} parent=11 // pred_check
          %p340 = pneg %p183
        $region30: #{tpu_custom_call.1} parent=11 // pred_check_branch
          %342 = sbr.rel (%p340) target = $region32
        $region31: #{tpu_custom_call.1} parent=11 // pred_region
          %s344 = ssub.s32 2048, 2048
          %345 = vsyncadd [#allocation9], %s344
          %s346 = sshll.u32 [#allocation8], 4
          %s347 = int_to_ptr.vmem [resolvable:$true] %s346
          %352 = dma.hbm_to_vmem [thread:$0]  %s6, 2048, %s347, [#allocation9], 128, 128, 8
        $region32: #{tpu_custom_call.1} parent=11 // pred_fallthru
          _
        // Predicated region
        $region33: #{tpu_custom_call.1} parent=11 // pred_check
          %p353 = pneg %p204
        $region34: #{tpu_custom_call.1} parent=11 // pred_check_branch
          %355 = sbr.rel (%p353) target = $region36
        $region35: #{tpu_custom_call.1} parent=11 // pred_region
          %s357 = ssub.s32 6144, 6144
          %358 = vsyncadd [#allocation9], %s357
          %s359 = sshll.u32 [#allocation10], 4
          %s360 = int_to_ptr.vmem [resolvable:$true] %s359
          %365 = dma.hbm_to_vmem [thread:$0]  %s7, 6144, %s360, [#allocation9], 128, 128, 8
        $region36: #{tpu_custom_call.1} parent=11 // pred_fallthru
          _
        // Predicated region
        $region37: #{tpu_custom_call.1} parent=11 // pred_check
          %p366 = pneg %p225
        $region38: #{tpu_custom_call.1} parent=11 // pred_check_branch
          %368 = sbr.rel (%p366) target = $region40
        $region39: #{tpu_custom_call.1} parent=11 // pred_region
          %s370 = ssub.s32 4096, 4096
          %371 = vsyncadd [#allocation12], %s370
          %s372 = sshll.u32 [#allocation11], 4
          %s373 = int_to_ptr.vmem [resolvable:$true] %s372
          %378 = dma.hbm_to_vmem [thread:$0]  %s8, 4096, %s373, [#allocation12], 256, 256, 16
        $region40: #{tpu_custom_call.1} parent=11 // pred_fallthru
          _
        // Predicated region
        $region41: #{tpu_custom_call.1} parent=11 // pred_check
          %p379 = pneg %p246
        $region42: #{tpu_custom_call.1} parent=11 // pred_check_branch
          %381 = sbr.rel (%p379) target = $region44
        $region43: #{tpu_custom_call.1} parent=11 // pred_region
          %s383 = ssub.s32 4096, 4096
          %384 = vsyncadd [#allocation12], %s383
          %s385 = sshll.u32 [#allocation13], 4
          %s386 = int_to_ptr.vmem [resolvable:$true] %s385
          %391 = dma.hbm_to_vmem [thread:$0]  %s9, 4096, %s386, [#allocation12], 128, 128, 8
        $region44: #{tpu_custom_call.1} parent=11 // pred_fallthru
          _
        // Predicated region
        $region45: #{tpu_custom_call.1} parent=11 // pred_check
          %p392 = pneg %p267
        $region46: #{tpu_custom_call.1} parent=11 // pred_check_branch
          %394 = sbr.rel (%p392) target = $region48
        $region47: #{tpu_custom_call.1} parent=11 // pred_region
          _
        $region48: #{tpu_custom_call.1} parent=11 // pred_fallthru
          _
      $region12: #{tpu_custom_call.1} parent=5 // pred_fallthru
        _
      %p395 = scmp.lt.s32.totalorder %s26, 2
      // Predicated region
      $region49: #{tpu_custom_call.1} parent=5 // pred_check
        %p396 = pneg %p395
      $region50: #{tpu_custom_call.1} parent=5 // pred_check_branch
        %398 = sbr.rel (%p396) target = $region52
      $region51: #{tpu_custom_call.1} parent=5 // pred_region
        // Predicated region
        $region53: #{tpu_custom_call.1} parent=51 // pred_check
          %p399 = pneg %p46
        $region54: #{tpu_custom_call.1} parent=51 // pred_check_branch
          %401 = sbr.rel (%p399) target = $region56
        $region55: #{tpu_custom_call.1} parent=51 // pred_region
          %s402 = sand.u32 %s36, 1
          %s403 = scalar_lea.sflag [#allocation3], %s402
          %s404 = sand.u32 %s36, 1
          %s405 = smul.addr %s404, 16
          %s406 = scalar_lea.vmem [#allocation2], %s405
          %s407 = smul.u32 2, %s26
          %s409 = ssub.s32 256, 256
          %410 = vsyncadd %s403, %s409
          %s411 = smul.addr %s407, 128
          %s412 = scalar_lea.hbm %s0, %s411
          %s413 = sshll.u32 %s406, 4
          %s414 = int_to_ptr.vmem [resolvable:$true] %s413
          %419 = dma.hbm_to_vmem [thread:$0]  %s412, 256, %s414, %s403, 128, 128, 8
        $region56: #{tpu_custom_call.1} parent=51 // pred_fallthru
          _
        // Predicated region
        $region57: #{tpu_custom_call.1} parent=51 // pred_check
          %p420 = pneg %p72
        $region58: #{tpu_custom_call.1} parent=51 // pred_check_branch
          %422 = sbr.rel (%p420) target = $region60
        $region59: #{tpu_custom_call.1} parent=51 // pred_region
          %p423 = scmp.lt.s32.totalorder %s26, 1
          %s424 = scalar_select %p423, %s26, 1
          %s425 = smul.addr %s424, 8
          %s426 = scalar_lea.vmem %s1, %s425
        $region60: #{tpu_custom_call.1} parent=51 // pred_fallthru
          _
      $region52: #{tpu_custom_call.1} parent=5 // pred_fallthru
        _
      %p427 = scmp.le.s32.totalorder 1, %s26
      %p428 = scmp.lt.s32.totalorder %s26, 3
      %p429 = pnand %p427, %p428
      %p430 = pneg %p429
      // Predicated region
      $region61: #{tpu_custom_call.1} parent=5 // pred_check
        _
      $region62: #{tpu_custom_call.1} parent=5 // pred_check_branch
        %432 = sbr.rel (%p429) target = $region64
      $region63: #{tpu_custom_call.1} parent=5 // pred_region
        %s433 = ssub.s32 %s26, 1
        %s434 = sand.u32 %s39, 1
        %s435 = scalar_lea.sflag [#allocation3], %s434
        %s436 = sand.u32 %s39, 1
        %s437 = smul.addr %s436, 16
        %s438 = scalar_lea.vmem [#allocation2], %s437
        // Predicated region
        $region65: #{tpu_custom_call.1} parent=63 // pred_check
          %p439 = pneg %p52
        $region66: #{tpu_custom_call.1} parent=63 // pred_check_branch
          %441 = sbr.rel (%p439) target = $region68
        $region67: #{tpu_custom_call.1} parent=63 // pred_region
          %442 = dma.done %s435, 256
        $region68: #{tpu_custom_call.1} parent=63 // pred_fallthru
          _
        // Predicated region
        $region69: #{tpu_custom_call.1} parent=63 // pred_check
          %p443 = pneg %p120
        $region70: #{tpu_custom_call.1} parent=63 // pred_check_branch
          %445 = sbr.rel (%p443) target = $region72
        $region71: #{tpu_custom_call.1} parent=63 // pred_region
          %446 = dma.done [#allocation6], 2048
        $region72: #{tpu_custom_call.1} parent=63 // pred_fallthru
          _
        // Predicated region
        $region73: #{tpu_custom_call.1} parent=63 // pred_check
          %p447 = pneg %p162
        $region74: #{tpu_custom_call.1} parent=63 // pred_check_branch
          %449 = sbr.rel (%p447) target = $region76
        $region75: #{tpu_custom_call.1} parent=63 // pred_region
          %450 = dma.done [#allocation6], 2048
        $region76: #{tpu_custom_call.1} parent=63 // pred_fallthru
          _
        // Predicated region
        $region77: #{tpu_custom_call.1} parent=63 // pred_check
          %p451 = pneg %p183
        $region78: #{tpu_custom_call.1} parent=63 // pred_check_branch
          %453 = sbr.rel (%p451) target = $region80
        $region79: #{tpu_custom_call.1} parent=63 // pred_region
          %454 = dma.done [#allocation9], 2048
        $region80: #{tpu_custom_call.1} parent=63 // pred_fallthru
          _
        // Predicated region
        $region81: #{tpu_custom_call.1} parent=63 // pred_check
          %p455 = pneg %p204
        $region82: #{tpu_custom_call.1} parent=63 // pred_check_branch
          %457 = sbr.rel (%p455) target = $region84
        $region83: #{tpu_custom_call.1} parent=63 // pred_region
          %458 = dma.done [#allocation9], 6144
        $region84: #{tpu_custom_call.1} parent=63 // pred_fallthru
          _
        // Predicated region
        $region85: #{tpu_custom_call.1} parent=63 // pred_check
          %p459 = pneg %p225
        $region86: #{tpu_custom_call.1} parent=63 // pred_check_branch
          %461 = sbr.rel (%p459) target = $region88
        $region87: #{tpu_custom_call.1} parent=63 // pred_region
          %462 = dma.done [#allocation12], 4096
        $region88: #{tpu_custom_call.1} parent=63 // pred_fallthru
          _
        // Predicated region
        $region89: #{tpu_custom_call.1} parent=63 // pred_check
          %p463 = pneg %p246
        $region90: #{tpu_custom_call.1} parent=63 // pred_check_branch
          %465 = sbr.rel (%p463) target = $region92
        $region91: #{tpu_custom_call.1} parent=63 // pred_region
          %466 = dma.done [#allocation12], 4096
        $region92: #{tpu_custom_call.1} parent=63 // pred_fallthru
          _
        %s467 = sand.u32 %s39, 1
        %s468 = scalar_lea.sflag [#allocation3], %s467
        %s469 = sand.u32 %s39, 1
        %s470 = smul.addr %s469, 16
        %s471 = scalar_lea.vmem [#allocation2], %s470
        %p472 = pneg %p52
        %p473 = pneg %p49
        %p474 = scmp.lt.s32.totalorder %s31, 1
        %s475 = scalar_select %p474, %s31, 1
        %s476 = smul.addr %s475, 8
        %s477 = scalar_lea.vmem %s1, %s476
        %p478 = pneg %p78
        %p479 = pneg %p75
        %p480 = pneg %p99
        %p481 = pneg %p96
        %p482 = pneg %p120
        %p483 = pneg %p117
        %p484 = pneg %p141
        %p485 = pneg %p138
        %p486 = pneg %p162
        %p487 = pneg %p159
        %p488 = pneg %p183
        %p489 = pneg %p180
        %p490 = pneg %p204
        %p491 = pneg %p201
        %p492 = pneg %p225
        %p493 = pneg %p222
        %p494 = pneg %p246
        %p495 = pneg %p243
        %p496 = pneg %p267
        %p497 = pneg %p264
        %p498 = pneg %p293
        %p499 = pneg %p290
        %s500 = sand.u32 %s280, 1
        %s501 = scalar_lea.sflag [#allocation4], %s500
        %s502 = sand.u32 %s280, 1
        %s503 = smul.addr %s502, 16
        %s504 = scalar_lea.vmem [#allocation14], %s503
        %s505 = smul.u32 2, %s31
        %p506 = scmp.lt.s32.totalorder %s31, 1
        %s507 = scalar_select %p506, %s31, 1
        %s508 = smul.addr %s507, 8
        %s509 = scalar_lea.vmem %s1, %s508
        %s510 = smul.u32 2, %s31
        %v511 = vld [vmem:[%s10] sm:$0xff]
        %v512 = vld [vmem:[%s509] sm:$0xff]
        %v513 = vld [vmem:[#allocation5] sm:$0xff]
        %v514 = vld [vmem:[#allocation5 + $0x8] sm:$0xff]
        %v515 = vld [vmem:[#allocation5 + $0x10] sm:$0xff]
        %v516 = vld [vmem:[#allocation5 + $0x18] sm:$0xff]
        %v517 = vld [vmem:[#allocation5 + $0x20] sm:$0xff]
        %v518 = vld [vmem:[#allocation5 + $0x28] sm:$0xff]
        %v519 = vld [vmem:[#allocation5 + $0x30] sm:$0xff]
        %v520 = vld [vmem:[#allocation5 + $0x38] sm:$0xff]
        %v521 = vld [vmem:[#allocation5 + $0x40] sm:$0xff]
        %v522 = vld [vmem:[#allocation5 + $0x48] sm:$0xff]
        %v523 = vld [vmem:[#allocation5 + $0x50] sm:$0xff]
        %v524 = vld [vmem:[#allocation5 + $0x58] sm:$0xff]
        %v525 = vld [vmem:[#allocation5 + $0x60] sm:$0xff]
        %v526 = vld [vmem:[#allocation5 + $0x68] sm:$0xff]
        %v527 = vld [vmem:[#allocation5 + $0x70] sm:$0xff]
        %v528 = vld [vmem:[#allocation5 + $0x78] sm:$0xff]
        %v529 = vld [vmem:[%s4] sm:$0x1]
        %v531 = vlaneseq
        %v532 = vshrl.u32 %v531, 7
        %v533 = vsub.s32 0, %v532
        %v534 = vrot.slane %v529, %v533
        %536 = vmatprep.subr.mxu0 0.0
        %537 = vmatpush1.msra.mxu0 %v528
        %538 = vmatprep.subr.mxu0 0.0
        %539 = vmatpush1.msra.mxu0 %v527
        %540 = vmatprep.subr.mxu0 0.0
        %541 = vmatpush1.msra.mxu0 %v526
        %542 = vmatprep.subr.mxu0 0.0
        %543 = vmatpush1.msra.mxu0 %v525
        %544 = vmatprep.subr.mxu0 0.0
        %545 = vmatpush1.msra.mxu0 %v524
        %546 = vmatprep.subr.mxu0 0.0
        %547 = vmatpush1.msra.mxu0 %v523
        %548 = vmatprep.subr.mxu0 0.0
        %549 = vmatpush1.msra.mxu0 %v522
        %550 = vmatprep.subr.mxu0 0.0
        %551 = vmatpush1.msra.mxu0 %v521
        %552 = vmatprep.subr.mxu0 0.0
        %553 = vmatpush1.msra.mxu0 %v520
        %554 = vmatprep.subr.mxu0 0.0
        %555 = vmatpush1.msra.mxu0 %v519
        %556 = vmatprep.subr.mxu0 0.0
        %557 = vmatpush1.msra.mxu0 %v518
        %558 = vmatprep.subr.mxu0 0.0
        %559 = vmatpush1.msra.mxu0 %v517
        %560 = vmatprep.subr.mxu0 0.0
        %561 = vmatpush1.msra.mxu0 %v516
        %562 = vmatprep.subr.mxu0 0.0
        %563 = vmatpush1.msra.mxu0 %v515
        %564 = vmatprep.subr.mxu0 0.0
        %565 = vmatpush1.msra.mxu0 %v514
        %566 = vmatprep.subr.mxu0 0.0
        %567 = vmatpush1.msra.mxu0 %v513
        %568 = vmatprep.subr.mxu0 0.0
        %569 = vmatpush2.msra.mxu0 0.0
        %570 = vmatprep.subr.mxu0 0.0
        %571 = vmatpush2.msra.mxu0 0.0
        %572 = vmatprep.subr.mxu0 0.0
        %573 = vmatpush2.msra.mxu0 0.0
        %574 = vmatprep.subr.mxu0 0.0
        %575 = vmatpush2.msra.mxu0 0.0
        %576 = vmatprep.subr.mxu0 0.0
        %577 = vmatpush2.msra.mxu0 0.0
        %578 = vmatprep.subr.mxu0 0.0
        %579 = vmatpush2.msra.mxu0 0.0
        %580 = vmatprep.subr.mxu0 0.0
        %581 = vmatpush2.msra.mxu0 0.0
        %582 = vmatprep.subr.mxu0 0.0
        %583 = vmatpush2.msra.mxu0 0.0
        %584 = vmatprep.subr.mxu0 0.0
        %585 = vmatpush2.msra.mxu0 0.0
        %586 = vmatprep.subr.mxu0 0.0
        %587 = vmatpush2.msra.mxu0 0.0
        %588 = vmatprep.subr.mxu0 0.0
        %589 = vmatpush2.msra.mxu0 0.0
        %590 = vmatprep.subr.mxu0 0.0
        %591 = vmatpush2.msra.mxu0 0.0
        %592 = vmatprep.subr.mxu0 0.0
        %593 = vmatpush2.msra.mxu0 0.0
        %594 = vmatprep.subr.mxu0 0.0
        %595 = vmatpush2.msra.mxu0 0.0
        %596 = vmatprep.subr.mxu0 0.0
        %597 = vmatpush2.msra.mxu0 0.0
        %598 = vmatprep.subr.mxu0 0.0
        %599 = vmatpush2.msra.mxu0 0.0
        %600 = vmatprep.mubr.f32.mxu0 0.0
        %601 = vmatmul.mubr.f32.gmra.mxu0 %v512
        %v602 = vpop.f32.mrf.mxu0
        %v603 = vadd.f32 %v534, %v602
        %v604 = vpop.f32.mrf.mxu0
        %605 = vdwg.mxu0
        %vm606 = vcmp.gt.f32.partialorder %v603, 20.0
        %v607 = vmin.f32 %v603, 20.0
        %v608 = vmul.f32 %v607, 1.442695
        %v609 = vpow.pop %v608
        %v610 = vadd.f32 %v609, 1.0
        %v611 = vlog2.pop %v610
        %v612 = vmul.f32 %v611, 0.6931472
        %v613 = vmul.f32 -0.5, %v609
        %v614 = vadd.f32 %v613, 1.0
        %v615 = vmul.f32 %v614, %v609
        %v616 = vand.u32 2147483647, %v609
        %vm617 = vcmp.lt.f32.partialorder %v616, 0.0004427343
        %v618 = vsel %vm617, %v615, %v612
        %v619 = vsel %vm606, %v603, %v618
        %v620 = vld [vmem:[#allocation7] sm:$0xff]
        %v621 = vld [vmem:[#allocation7 + $0x8] sm:$0xff]
        %v622 = vld [vmem:[#allocation7 + $0x10] sm:$0xff]
        %v623 = vld [vmem:[#allocation7 + $0x18] sm:$0xff]
        %v624 = vld [vmem:[#allocation7 + $0x20] sm:$0xff]
        %v625 = vld [vmem:[#allocation7 + $0x28] sm:$0xff]
        %v626 = vld [vmem:[#allocation7 + $0x30] sm:$0xff]
        %v627 = vld [vmem:[#allocation7 + $0x38] sm:$0xff]
        %v628 = vld [vmem:[#allocation7 + $0x40] sm:$0xff]
        %v629 = vld [vmem:[#allocation7 + $0x48] sm:$0xff]
        %v630 = vld [vmem:[#allocation7 + $0x50] sm:$0xff]
        %v631 = vld [vmem:[#allocation7 + $0x58] sm:$0xff]
        %v632 = vld [vmem:[#allocation7 + $0x60] sm:$0xff]
        %v633 = vld [vmem:[#allocation7 + $0x68] sm:$0xff]
        %v634 = vld [vmem:[#allocation7 + $0x70] sm:$0xff]
        %v635 = vld [vmem:[#allocation7 + $0x78] sm:$0xff]
        %v636 = vlaneseq
        %v637 = vshrl.u32 %v636, 7
        %v638 = vsub.s32 0, %v637
        %v639 = vrot.slane %v511, %v638
        %640 = vmatprep.subr.mxu0 0.0
        %641 = vmatpush1.msra.mxu0 %v635
        %642 = vmatprep.subr.mxu0 0.0
        %643 = vmatpush1.msra.mxu0 %v634
        %644 = vmatprep.subr.mxu0 0.0
        %645 = vmatpush1.msra.mxu0 %v633
        %646 = vmatprep.subr.mxu0 0.0
        %647 = vmatpush1.msra.mxu0 %v632
        %648 = vmatprep.subr.mxu0 0.0
        %649 = vmatpush1.msra.mxu0 %v631
        %650 = vmatprep.subr.mxu0 0.0
        %651 = vmatpush1.msra.mxu0 %v630
        %652 = vmatprep.subr.mxu0 0.0
        %653 = vmatpush1.msra.mxu0 %v629
        %654 = vmatprep.subr.mxu0 0.0
        %655 = vmatpush1.msra.mxu0 %v628
        %656 = vmatprep.subr.mxu0 0.0
        %657 = vmatpush1.msra.mxu0 %v627
        %658 = vmatprep.subr.mxu0 0.0
        %659 = vmatpush1.msra.mxu0 %v626
        %660 = vmatprep.subr.mxu0 0.0
        %661 = vmatpush1.msra.mxu0 %v625
        %662 = vmatprep.subr.mxu0 0.0
        %663 = vmatpush1.msra.mxu0 %v624
        %664 = vmatprep.subr.mxu0 0.0
        %665 = vmatpush1.msra.mxu0 %v623
        %666 = vmatprep.subr.mxu0 0.0
        %667 = vmatpush1.msra.mxu0 %v622
        %668 = vmatprep.subr.mxu0 0.0
        %669 = vmatpush1.msra.mxu0 %v621
        %670 = vmatprep.subr.mxu0 0.0
        %671 = vmatpush1.msra.mxu0 %v620
        %672 = vmatprep.subr.mxu0 0.0
        %673 = vmatpush2.msra.mxu0 0.0
        %674 = vmatprep.subr.mxu0 0.0
        %675 = vmatpush2.msra.mxu0 0.0
        %676 = vmatprep.subr.mxu0 0.0
        %677 = vmatpush2.msra.mxu0 0.0
        %678 = vmatprep.subr.mxu0 0.0
        %679 = vmatpush2.msra.mxu0 0.0
        %680 = vmatprep.subr.mxu0 0.0
        %681 = vmatpush2.msra.mxu0 0.0
        %682 = vmatprep.subr.mxu0 0.0
        %683 = vmatpush2.msra.mxu0 0.0
        %684 = vmatprep.subr.mxu0 0.0
        %685 = vmatpush2.msra.mxu0 0.0
        %686 = vmatprep.subr.mxu0 0.0
        %687 = vmatpush2.msra.mxu0 0.0
        %688 = vmatprep.subr.mxu0 0.0
        %689 = vmatpush2.msra.mxu0 0.0
        %690 = vmatprep.subr.mxu0 0.0
        %691 = vmatpush2.msra.mxu0 0.0
        %692 = vmatprep.subr.mxu0 0.0
        %693 = vmatpush2.msra.mxu0 0.0
        %694 = vmatprep.subr.mxu0 0.0
        %695 = vmatpush2.msra.mxu0 0.0
        %696 = vmatprep.subr.mxu0 0.0
        %697 = vmatpush2.msra.mxu0 0.0
        %698 = vmatprep.subr.mxu0 0.0
        %699 = vmatpush2.msra.mxu0 0.0
        %700 = vmatprep.subr.mxu0 0.0
        %701 = vmatpush2.msra.mxu0 0.0
        %702 = vmatprep.subr.mxu0 0.0
        %703 = vmatpush2.msra.mxu0 0.0
        %704 = vmatprep.mubr.f32.mxu0 0.0
        %705 = vmatmul.mubr.f32.gmra.mxu0 %v619
        %v706 = vpop.f32.mrf.mxu0
        %v707 = vadd.f32 %v639, %v706
        %v708 = vpop.f32.mrf.mxu0
        %709 = vdwg.mxu0
        %vm710 = vcmp.gt.f32.partialorder %v707, 20.0
        %v711 = vmin.f32 %v707, 20.0
        %v712 = vmul.f32 %v711, 1.442695
        %v713 = vpow.pop %v712
        %v714 = vadd.f32 %v713, 1.0
        %v715 = vlog2.pop %v714
        %v716 = vmul.f32 %v715, 0.6931472
        %v717 = vmul.f32 -0.5, %v713
        %v718 = vadd.f32 %v717, 1.0
        %v719 = vmul.f32 %v718, %v713
        %v720 = vand.u32 2147483647, %v713
        %vm721 = vcmp.lt.f32.partialorder %v720, 0.0004427343
        %v722 = vsel %vm721, %v719, %v716
        %v723 = vsel %vm710, %v707, %v722
        %v724 = vld [vmem:[#allocation8] sm:$0xff]
        %v725 = vld [vmem:[#allocation8 + $0x8] sm:$0xff]
        %v726 = vld [vmem:[#allocation8 + $0x10] sm:$0xff]
        %v727 = vld [vmem:[#allocation8 + $0x18] sm:$0xff]
        %v728 = vld [vmem:[#allocation8 + $0x20] sm:$0xff]
        %v729 = vld [vmem:[#allocation8 + $0x28] sm:$0xff]
        %v730 = vld [vmem:[#allocation8 + $0x30] sm:$0xff]
        %v731 = vld [vmem:[#allocation8 + $0x38] sm:$0xff]
        %v732 = vld [vmem:[#allocation8 + $0x40] sm:$0xff]
        %v733 = vld [vmem:[#allocation8 + $0x48] sm:$0xff]
        %v734 = vld [vmem:[#allocation8 + $0x50] sm:$0xff]
        %v735 = vld [vmem:[#allocation8 + $0x58] sm:$0xff]
        %v736 = vld [vmem:[#allocation8 + $0x60] sm:$0xff]
        %v737 = vld [vmem:[#allocation8 + $0x68] sm:$0xff]
        %v738 = vld [vmem:[#allocation8 + $0x70] sm:$0xff]
        %v739 = vld [vmem:[#allocation8 + $0x78] sm:$0xff]
        %v740 = vlaneseq
        %v741 = vshrl.u32 %v740, 7
        %v742 = vsub.s32 1, %v741
        %v743 = vrot.slane %v511, %v742
        %744 = vmatprep.subr.mxu0 0.0
        %745 = vmatpush1.msra.mxu0 %v739
        %746 = vmatprep.subr.mxu0 0.0
        %747 = vmatpush1.msra.mxu0 %v738
        %748 = vmatprep.subr.mxu0 0.0
        %749 = vmatpush1.msra.mxu0 %v737
        %750 = vmatprep.subr.mxu0 0.0
        %751 = vmatpush1.msra.mxu0 %v736
        %752 = vmatprep.subr.mxu0 0.0
        %753 = vmatpush1.msra.mxu0 %v735
        %754 = vmatprep.subr.mxu0 0.0
        %755 = vmatpush1.msra.mxu0 %v734
        %756 = vmatprep.subr.mxu0 0.0
        %757 = vmatpush1.msra.mxu0 %v733
        %758 = vmatprep.subr.mxu0 0.0
        %759 = vmatpush1.msra.mxu0 %v732
        %760 = vmatprep.subr.mxu0 0.0
        %761 = vmatpush1.msra.mxu0 %v731
        %762 = vmatprep.subr.mxu0 0.0
        %763 = vmatpush1.msra.mxu0 %v730
        %764 = vmatprep.subr.mxu0 0.0
        %765 = vmatpush1.msra.mxu0 %v729
        %766 = vmatprep.subr.mxu0 0.0
        %767 = vmatpush1.msra.mxu0 %v728
        %768 = vmatprep.subr.mxu0 0.0
        %769 = vmatpush1.msra.mxu0 %v727
        %770 = vmatprep.subr.mxu0 0.0
        %771 = vmatpush1.msra.mxu0 %v726
        %772 = vmatprep.subr.mxu0 0.0
        %773 = vmatpush1.msra.mxu0 %v725
        %774 = vmatprep.subr.mxu0 0.0
        %775 = vmatpush1.msra.mxu0 %v724
        %776 = vmatprep.subr.mxu0 0.0
        %777 = vmatpush2.msra.mxu0 0.0
        %778 = vmatprep.subr.mxu0 0.0
        %779 = vmatpush2.msra.mxu0 0.0
        %780 = vmatprep.subr.mxu0 0.0
        %781 = vmatpush2.msra.mxu0 0.0
        %782 = vmatprep.subr.mxu0 0.0
        %783 = vmatpush2.msra.mxu0 0.0
        %784 = vmatprep.subr.mxu0 0.0
        %785 = vmatpush2.msra.mxu0 0.0
        %786 = vmatprep.subr.mxu0 0.0
        %787 = vmatpush2.msra.mxu0 0.0
        %788 = vmatprep.subr.mxu0 0.0
        %789 = vmatpush2.msra.mxu0 0.0
        %790 = vmatprep.subr.mxu0 0.0
        %791 = vmatpush2.msra.mxu0 0.0
        %792 = vmatprep.subr.mxu0 0.0
        %793 = vmatpush2.msra.mxu0 0.0
        %794 = vmatprep.subr.mxu0 0.0
        %795 = vmatpush2.msra.mxu0 0.0
        %796 = vmatprep.subr.mxu0 0.0
        %797 = vmatpush2.msra.mxu0 0.0
        %798 = vmatprep.subr.mxu0 0.0
        %799 = vmatpush2.msra.mxu0 0.0
        %800 = vmatprep.subr.mxu0 0.0
        %801 = vmatpush2.msra.mxu0 0.0
        %802 = vmatprep.subr.mxu0 0.0
        %803 = vmatpush2.msra.mxu0 0.0
        %804 = vmatprep.subr.mxu0 0.0
        %805 = vmatpush2.msra.mxu0 0.0
        %806 = vmatprep.subr.mxu0 0.0
        %807 = vmatpush2.msra.mxu0 0.0
        %808 = vmatprep.mubr.f32.mxu0 0.0
        %809 = vmatmul.mubr.f32.gmra.mxu0 %v723
        %v810 = vpop.f32.mrf.mxu0
        %v811 = vadd.f32 %v743, %v810
        %v812 = vpop.f32.mrf.mxu0
        %813 = vdwg.mxu0
        %v814 = vsub.f32 0.0, %v811
        %v815 = vmul.f32 %v814, 1.442695
        %v816 = vpow.pop %v815
        %v817 = vadd.f32 %v816, 1.0
        %v818 = vrcp.pop %v817
        %v819 = vmul.f32 %v723, %v818
        %v820 = vld [vmem:[%s2] sm:$0xff]
        %v821 = vld [vmem:[%s2 + $0x8] sm:$0xff]
        %vm822 = vcmask 64512
        %v824 = vsel %vm822, %v820, 0
        %v827 = vsel %vm822, %v821, 0
        %829 = vmatprep.subr.mxu0 0.0
        %830 = vmatpush1.msra.mxu0 0.0
        %831 = vmatprep.subr.mxu0 0.0
        %832 = vmatpush1.msra.mxu0 0.0
        %833 = vmatprep.subr.mxu0 0.0
        %834 = vmatpush1.msra.mxu0 0.0
        %835 = vmatprep.subr.mxu0 0.0
        %836 = vmatpush1.msra.mxu0 0.0
        %837 = vmatprep.subr.mxu0 0.0
        %838 = vmatpush1.msra.mxu0 0.0
        %839 = vmatprep.subr.mxu0 0.0
        %840 = vmatpush1.msra.mxu0 0.0
        %841 = vmatprep.subr.mxu0 0.0
        %842 = vmatpush1.msra.mxu0 0.0
        %843 = vmatprep.subr.mxu0 0.0
        %844 = vmatpush1.msra.mxu0 0.0
        %845 = vmatprep.subr.mxu0 0.0
        %846 = vmatpush1.msra.mxu0 0.0
        %847 = vmatprep.subr.mxu0 0.0
        %848 = vmatpush1.msra.mxu0 0.0
        %849 = vmatprep.subr.mxu0 0.0
        %850 = vmatpush1.msra.mxu0 0.0
        %851 = vmatprep.subr.mxu0 0.0
        %852 = vmatpush1.msra.mxu0 0.0
        %853 = vmatprep.subr.mxu0 0.0
        %854 = vmatpush1.msra.mxu0 0.0
        %855 = vmatprep.subr.mxu0 0.0
        %856 = vmatpush1.msra.mxu0 0.0
        %857 = vmatprep.subr.mxu0 0.0
        %858 = vmatpush1.msra.mxu0 0.0
        %859 = vmatprep.subr.mxu0 0.0
        %860 = vmatpush1.msra.mxu0 %v723
        %861 = vmatprep.subr.mxu0 0.0
        %862 = vmatpush2.msra.mxu0 0.0
        %863 = vmatprep.subr.mxu0 0.0
        %864 = vmatpush2.msra.mxu0 0.0
        %865 = vmatprep.subr.mxu0 0.0
        %866 = vmatpush2.msra.mxu0 0.0
        %867 = vmatprep.subr.mxu0 0.0
        %868 = vmatpush2.msra.mxu0 0.0
        %869 = vmatprep.subr.mxu0 0.0
        %870 = vmatpush2.msra.mxu0 0.0
        %871 = vmatprep.subr.mxu0 0.0
        %872 = vmatpush2.msra.mxu0 0.0
        %873 = vmatprep.subr.mxu0 0.0
        %874 = vmatpush2.msra.mxu0 0.0
        %875 = vmatprep.subr.mxu0 0.0
        %876 = vmatpush2.msra.mxu0 0.0
        %877 = vmatprep.subr.mxu0 0.0
        %878 = vmatpush2.msra.mxu0 0.0
        %879 = vmatprep.subr.mxu0 0.0
        %880 = vmatpush2.msra.mxu0 0.0
        %881 = vmatprep.subr.mxu0 0.0
        %882 = vmatpush2.msra.mxu0 0.0
        %883 = vmatprep.subr.mxu0 0.0
        %884 = vmatpush2.msra.mxu0 0.0
        %885 = vmatprep.subr.mxu0 0.0
        %886 = vmatpush2.msra.mxu0 0.0
        %887 = vmatprep.subr.mxu0 0.0
        %888 = vmatpush2.msra.mxu0 0.0
        %889 = vmatprep.subr.mxu0 0.0
        %890 = vmatpush2.msra.mxu0 0.0
        %891 = vmatprep.subr.mxu0 0.0
        %892 = vmatpush2.msra.mxu0 0.0
        %893 = vmatprep.mubr.f32.mxu0 0.0
        %894 = vmatmul.mubr.f32.gmra.mxu0 %v824
        %v895 = vpop.f32.mrf.mxu0
        %v896 = vadd.f32 0.0, %v895
        %v897 = vpop.f32.mrf.mxu0
        %898 = vmatprep.mubr.f32.mxu0 0.0
        %899 = vmatmul.mubr.f32.gmra.mxu0 %v827
        %v900 = vpop.f32.mrf.mxu0
        %v901 = vadd.f32 0.0, %v900
        %v902 = vpop.f32.mrf.mxu0
        %903 = vdwg.mxu0
        %904 = vmatprep.subr.mxu0 0.0
        %905 = vmatpush1.msra.mxu0 0.0
        %906 = vmatprep.subr.mxu0 0.0
        %907 = vmatpush1.msra.mxu0 0.0
        %908 = vmatprep.subr.mxu0 0.0
        %909 = vmatpush1.msra.mxu0 0.0
        %910 = vmatprep.subr.mxu0 0.0
        %911 = vmatpush1.msra.mxu0 0.0
        %912 = vmatprep.subr.mxu0 0.0
        %913 = vmatpush1.msra.mxu0 0.0
        %914 = vmatprep.subr.mxu0 0.0
        %915 = vmatpush1.msra.mxu0 0.0
        %916 = vmatprep.subr.mxu0 0.0
        %917 = vmatpush1.msra.mxu0 0.0
        %918 = vmatprep.subr.mxu0 0.0
        %919 = vmatpush1.msra.mxu0 0.0
        %920 = vmatprep.subr.mxu0 0.0
        %921 = vmatpush1.msra.mxu0 0.0
        %922 = vmatprep.subr.mxu0 0.0
        %923 = vmatpush1.msra.mxu0 0.0
        %924 = vmatprep.subr.mxu0 0.0
        %925 = vmatpush1.msra.mxu0 0.0
        %926 = vmatprep.subr.mxu0 0.0
        %927 = vmatpush1.msra.mxu0 0.0
        %928 = vmatprep.subr.mxu0 0.0
        %929 = vmatpush1.msra.mxu0 0.0
        %930 = vmatprep.subr.mxu0 0.0
        %931 = vmatpush1.msra.mxu0 0.0
        %932 = vmatprep.subr.mxu0 0.0
        %933 = vmatpush1.msra.mxu0 0.0
        %934 = vmatprep.subr.mxu0 0.0
        %935 = vmatpush1.msra.mxu0 %v819
        %936 = vmatprep.subr.mxu0 0.0
        %937 = vmatpush2.msra.mxu0 0.0
        %938 = vmatprep.subr.mxu0 0.0
        %939 = vmatpush2.msra.mxu0 0.0
        %940 = vmatprep.subr.mxu0 0.0
        %941 = vmatpush2.msra.mxu0 0.0
        %942 = vmatprep.subr.mxu0 0.0
        %943 = vmatpush2.msra.mxu0 0.0
        %944 = vmatprep.subr.mxu0 0.0
        %945 = vmatpush2.msra.mxu0 0.0
        %946 = vmatprep.subr.mxu0 0.0
        %947 = vmatpush2.msra.mxu0 0.0
        %948 = vmatprep.subr.mxu0 0.0
        %949 = vmatpush2.msra.mxu0 0.0
        %950 = vmatprep.subr.mxu0 0.0
        %951 = vmatpush2.msra.mxu0 0.0
        %952 = vmatprep.subr.mxu0 0.0
        %953 = vmatpush2.msra.mxu0 0.0
        %954 = vmatprep.subr.mxu0 0.0
        %955 = vmatpush2.msra.mxu0 0.0
        %956 = vmatprep.subr.mxu0 0.0
        %957 = vmatpush2.msra.mxu0 0.0
        %958 = vmatprep.subr.mxu0 0.0
        %959 = vmatpush2.msra.mxu0 0.0
        %960 = vmatprep.subr.mxu0 0.0
        %961 = vmatpush2.msra.mxu0 0.0
        %962 = vmatprep.subr.mxu0 0.0
        %963 = vmatpush2.msra.mxu0 0.0
        %964 = vmatprep.subr.mxu0 0.0
        %965 = vmatpush2.msra.mxu0 0.0
        %966 = vmatprep.subr.mxu0 0.0
        %967 = vmatpush2.msra.mxu0 0.0
        %968 = vmatprep.mubr.f32.mxu0 0.0
        %969 = vmatmul.mubr.f32.gmra.mxu0 %v824
        %v970 = vpop.f32.mrf.mxu0
        %v971 = vadd.f32 0.0, %v970
        %v972 = vpop.f32.mrf.mxu0
        %973 = vmatprep.mubr.f32.mxu0 0.0
        %974 = vmatmul.mubr.f32.gmra.mxu0 %v827
        %v975 = vpop.f32.mrf.mxu0
        %v976 = vadd.f32 0.0, %v975
        %v977 = vpop.f32.mrf.mxu0
        %978 = vdwg.mxu0
        %s979 = scalar_lea.vmem [#allocation10], 128
        %v980 = vld [vmem:[%s979] sm:$0xff]
        %v981 = vld [vmem:[%s979 + $0x8] sm:$0xff]
        %v982 = vld [vmem:[%s979 + $0x10] sm:$0xff]
        %v983 = vld [vmem:[%s979 + $0x18] sm:$0xff]
        %v984 = vld [vmem:[%s979 + $0x20] sm:$0xff]
        %v985 = vld [vmem:[%s979 + $0x28] sm:$0xff]
        %v986 = vld [vmem:[%s979 + $0x30] sm:$0xff]
        %v987 = vld [vmem:[%s979 + $0x38] sm:$0xff]
        %v988 = vld [vmem:[%s979 + $0x40] sm:$0xff]
        %v989 = vld [vmem:[%s979 + $0x48] sm:$0xff]
        %v990 = vld [vmem:[%s979 + $0x50] sm:$0xff]
        %v991 = vld [vmem:[%s979 + $0x58] sm:$0xff]
        %v992 = vld [vmem:[%s979 + $0x60] sm:$0xff]
        %v993 = vld [vmem:[%s979 + $0x68] sm:$0xff]
        %v994 = vld [vmem:[%s979 + $0x70] sm:$0xff]
        %v995 = vld [vmem:[%s979 + $0x78] sm:$0xff]
        %vm998 = vcmask 1040384
        %v999 = vrot.slane %v971, 7
        %v1000 = vrot.slane %v976, 7
        %v1001 = vsel %vm998, %v999, %v1000
        %v1004 = vsel %vm998, 0.0, %v999
        %v1005 = vld [vmem:[#allocation10] sm:$0xff]
        %v1006 = vld [vmem:[#allocation10 + $0x8] sm:$0xff]
        %v1007 = vld [vmem:[#allocation10 + $0x10] sm:$0xff]
        %v1008 = vld [vmem:[#allocation10 + $0x18] sm:$0xff]
        %v1009 = vld [vmem:[#allocation10 + $0x20] sm:$0xff]
        %v1010 = vld [vmem:[#allocation10 + $0x28] sm:$0xff]
        %v1011 = vld [vmem:[#allocation10 + $0x30] sm:$0xff]
        %v1012 = vld [vmem:[#allocation10 + $0x38] sm:$0xff]
        %v1013 = vld [vmem:[#allocation10 + $0x40] sm:$0xff]
        %v1014 = vld [vmem:[#allocation10 + $0x48] sm:$0xff]
        %v1015 = vld [vmem:[#allocation10 + $0x50] sm:$0xff]
        %v1016 = vld [vmem:[#allocation10 + $0x58] sm:$0xff]
        %v1017 = vld [vmem:[#allocation10 + $0x60] sm:$0xff]
        %v1018 = vld [vmem:[#allocation10 + $0x68] sm:$0xff]
        %v1019 = vld [vmem:[#allocation10 + $0x70] sm:$0xff]
        %v1020 = vld [vmem:[#allocation10 + $0x78] sm:$0xff]
        %1021 = vmatprep.subr.mxu0 0.0
        %1022 = vmatpush1.msra.mxu0 %v1020
        %1023 = vmatprep.subr.mxu0 0.0
        %1024 = vmatpush1.msra.mxu0 %v1019
        %1025 = vmatprep.subr.mxu0 0.0
        %1026 = vmatpush1.msra.mxu0 %v1018
        %1027 = vmatprep.subr.mxu0 0.0
        %1028 = vmatpush1.msra.mxu0 %v1017
        %1029 = vmatprep.subr.mxu0 0.0
        %1030 = vmatpush1.msra.mxu0 %v1016
        %1031 = vmatprep.subr.mxu0 0.0
        %1032 = vmatpush1.msra.mxu0 %v1015
        %1033 = vmatprep.subr.mxu0 0.0
        %1034 = vmatpush1.msra.mxu0 %v1014
        %1035 = vmatprep.subr.mxu0 0.0
        %1036 = vmatpush1.msra.mxu0 %v1013
        %1037 = vmatprep.subr.mxu0 0.0
        %1038 = vmatpush1.msra.mxu0 %v1012
        %1039 = vmatprep.subr.mxu0 0.0
        %1040 = vmatpush1.msra.mxu0 %v1011
        %1041 = vmatprep.subr.mxu0 0.0
        %1042 = vmatpush1.msra.mxu0 %v1010
        %1043 = vmatprep.subr.mxu0 0.0
        %1044 = vmatpush1.msra.mxu0 %v1009
        %1045 = vmatprep.subr.mxu0 0.0
        %1046 = vmatpush1.msra.mxu0 %v1008
        %1047 = vmatprep.subr.mxu0 0.0
        %1048 = vmatpush1.msra.mxu0 %v1007
        %1049 = vmatprep.subr.mxu0 0.0
        %1050 = vmatpush1.msra.mxu0 %v1006
        %1051 = vmatprep.subr.mxu0 0.0
        %1052 = vmatpush1.msra.mxu0 %v1005
        %1053 = vmatprep.subr.mxu0 0.0
        %1054 = vmatpush2.msra.mxu0 0.0
        %1055 = vmatprep.subr.mxu0 0.0
        %1056 = vmatpush2.msra.mxu0 0.0
        %1057 = vmatprep.subr.mxu0 0.0
        %1058 = vmatpush2.msra.mxu0 0.0
        %1059 = vmatprep.subr.mxu0 0.0
        %1060 = vmatpush2.msra.mxu0 0.0
        %1061 = vmatprep.subr.mxu0 0.0
        %1062 = vmatpush2.msra.mxu0 0.0
        %1063 = vmatprep.subr.mxu0 0.0
        %1064 = vmatpush2.msra.mxu0 0.0
        %1065 = vmatprep.subr.mxu0 0.0
        %1066 = vmatpush2.msra.mxu0 0.0
        %1067 = vmatprep.subr.mxu0 0.0
        %1068 = vmatpush2.msra.mxu0 0.0
        %1069 = vmatprep.subr.mxu0 0.0
        %1070 = vmatpush2.msra.mxu0 0.0
        %1071 = vmatprep.subr.mxu0 0.0
        %1072 = vmatpush2.msra.mxu0 0.0
        %1073 = vmatprep.subr.mxu0 0.0
        %1074 = vmatpush2.msra.mxu0 0.0
        %1075 = vmatprep.subr.mxu0 0.0
        %1076 = vmatpush2.msra.mxu0 0.0
        %1077 = vmatprep.subr.mxu0 0.0
        %1078 = vmatpush2.msra.mxu0 0.0
        %1079 = vmatprep.subr.mxu0 0.0
        %1080 = vmatpush2.msra.mxu0 0.0
        %1081 = vmatprep.subr.mxu0 0.0
        %1082 = vmatpush2.msra.mxu0 0.0
        %1083 = vmatprep.subr.mxu0 0.0
        %1084 = vmatpush2.msra.mxu0 0.0
        %1085 = vmatprep.mubr.f32.mxu0 0.0
        %1086 = vmatmul.mubr.f32.gmra.mxu0 %v1004
        %v1087 = vpop.f32.mrf.mxu0
        %v1088 = vadd.f32 0.0, %v1087
        %v1089 = vpop.f32.mrf.mxu0
        %1090 = vmatprep.mubr.f32.mxu0 0.0
        %1091 = vmatmul.mubr.f32.gmra.mxu0 %v1001
        %v1092 = vpop.f32.mrf.mxu0
        %v1093 = vadd.f32 0.0, %v1092
        %v1094 = vpop.f32.mrf.mxu0
        %1095 = vdwg.mxu0
        %1096 = vmatprep.subr.mxu0 0.0
        %1097 = vmatpush1.msra.mxu0 %v995
        %1098 = vmatprep.subr.mxu0 0.0
        %1099 = vmatpush1.msra.mxu0 %v994
        %1100 = vmatprep.subr.mxu0 0.0
        %1101 = vmatpush1.msra.mxu0 %v993
        %1102 = vmatprep.subr.mxu0 0.0
        %1103 = vmatpush1.msra.mxu0 %v992
        %1104 = vmatprep.subr.mxu0 0.0
        %1105 = vmatpush1.msra.mxu0 %v991
        %1106 = vmatprep.subr.mxu0 0.0
        %1107 = vmatpush1.msra.mxu0 %v990
        %1108 = vmatprep.subr.mxu0 0.0
        %1109 = vmatpush1.msra.mxu0 %v989
        %1110 = vmatprep.subr.mxu0 0.0
        %1111 = vmatpush1.msra.mxu0 %v988
        %1112 = vmatprep.subr.mxu0 0.0
        %1113 = vmatpush1.msra.mxu0 %v987
        %1114 = vmatprep.subr.mxu0 0.0
        %1115 = vmatpush1.msra.mxu0 %v986
        %1116 = vmatprep.subr.mxu0 0.0
        %1117 = vmatpush1.msra.mxu0 %v985
        %1118 = vmatprep.subr.mxu0 0.0
        %1119 = vmatpush1.msra.mxu0 %v984
        %1120 = vmatprep.subr.mxu0 0.0
        %1121 = vmatpush1.msra.mxu0 %v983
        %1122 = vmatprep.subr.mxu0 0.0
        %1123 = vmatpush1.msra.mxu0 %v982
        %1124 = vmatprep.subr.mxu0 0.0
        %1125 = vmatpush1.msra.mxu0 %v981
        %1126 = vmatprep.subr.mxu0 0.0
        %1127 = vmatpush1.msra.mxu0 %v980
        %1128 = vmatprep.subr.mxu0 0.0
        %1129 = vmatpush2.msra.mxu0 0.0
        %1130 = vmatprep.subr.mxu0 0.0
        %1131 = vmatpush2.msra.mxu0 0.0
        %1132 = vmatprep.subr.mxu0 0.0
        %1133 = vmatpush2.msra.mxu0 0.0
        %1134 = vmatprep.subr.mxu0 0.0
        %1135 = vmatpush2.msra.mxu0 0.0
        %1136 = vmatprep.subr.mxu0 0.0
        %1137 = vmatpush2.msra.mxu0 0.0
        %1138 = vmatprep.subr.mxu0 0.0
        %1139 = vmatpush2.msra.mxu0 0.0
        %1140 = vmatprep.subr.mxu0 0.0
        %1141 = vmatpush2.msra.mxu0 0.0
        %1142 = vmatprep.subr.mxu0 0.0
        %1143 = vmatpush2.msra.mxu0 0.0
        %1144 = vmatprep.subr.mxu0 0.0
        %1145 = vmatpush2.msra.mxu0 0.0
        %1146 = vmatprep.subr.mxu0 0.0
        %1147 = vmatpush2.msra.mxu0 0.0
        %1148 = vmatprep.subr.mxu0 0.0
        %1149 = vmatpush2.msra.mxu0 0.0
        %1150 = vmatprep.subr.mxu0 0.0
        %1151 = vmatpush2.msra.mxu0 0.0
        %1152 = vmatprep.subr.mxu0 0.0
        %1153 = vmatpush2.msra.mxu0 0.0
        %1154 = vmatprep.subr.mxu0 0.0
        %1155 = vmatpush2.msra.mxu0 0.0
        %1156 = vmatprep.subr.mxu0 0.0
        %1157 = vmatpush2.msra.mxu0 0.0
        %1158 = vmatprep.subr.mxu0 0.0
        %1159 = vmatpush2.msra.mxu0 0.0
        %1160 = vmatprep.mubr.f32.mxu0 0.0
        %1161 = vmatmul.mubr.f32.gmra.mxu0 %v971
        %v1162 = vpop.f32.mrf.mxu0
        %v1163 = vadd.f32 %v1088, %v1162
        %v1164 = vpop.f32.mrf.mxu0
        %1165 = vmatprep.mubr.f32.mxu0 0.0
        %1166 = vmatmul.mubr.f32.gmra.mxu0 %v976
        %v1167 = vpop.f32.mrf.mxu0
        %v1168 = vadd.f32 %v1093, %v1167
        %v1169 = vpop.f32.mrf.mxu0
        %1170 = vdwg.mxu0
        %vm1171 = vcmask 1046528
        %v1172 = vrot.slane %v971, 1
        %v1173 = vrot.slane %v976, 1
        %v1174 = vsel %vm1171, %v1172, %v1173
        %v1177 = vsel %vm1171, %v1173, 0.0
        %s1178 = scalar_lea.vmem [#allocation10], 256
        %v1179 = vld [vmem:[%s1178] sm:$0xff]
        %v1180 = vld [vmem:[%s1178 + $0x8] sm:$0xff]
        %v1181 = vld [vmem:[%s1178 + $0x10] sm:$0xff]
        %v1182 = vld [vmem:[%s1178 + $0x18] sm:$0xff]
        %v1183 = vld [vmem:[%s1178 + $0x20] sm:$0xff]
        %v1184 = vld [vmem:[%s1178 + $0x28] sm:$0xff]
        %v1185 = vld [vmem:[%s1178 + $0x30] sm:$0xff]
        %v1186 = vld [vmem:[%s1178 + $0x38] sm:$0xff]
        %v1187 = vld [vmem:[%s1178 + $0x40] sm:$0xff]
        %v1188 = vld [vmem:[%s1178 + $0x48] sm:$0xff]
        %v1189 = vld [vmem:[%s1178 + $0x50] sm:$0xff]
        %v1190 = vld [vmem:[%s1178 + $0x58] sm:$0xff]
        %v1191 = vld [vmem:[%s1178 + $0x60] sm:$0xff]
        %v1192 = vld [vmem:[%s1178 + $0x68] sm:$0xff]
        %v1193 = vld [vmem:[%s1178 + $0x70] sm:$0xff]
        %v1194 = vld [vmem:[%s1178 + $0x78] sm:$0xff]
        %1195 = vmatprep.subr.mxu0 0.0
        %1196 = vmatpush1.msra.mxu0 %v1194
        %1197 = vmatprep.subr.mxu0 0.0
        %1198 = vmatpush1.msra.mxu0 %v1193
        %1199 = vmatprep.subr.mxu0 0.0
        %1200 = vmatpush1.msra.mxu0 %v1192
        %1201 = vmatprep.subr.mxu0 0.0
        %1202 = vmatpush1.msra.mxu0 %v1191
        %1203 = vmatprep.subr.mxu0 0.0
        %1204 = vmatpush1.msra.mxu0 %v1190
        %1205 = vmatprep.subr.mxu0 0.0
        %1206 = vmatpush1.msra.mxu0 %v1189
        %1207 = vmatprep.subr.mxu0 0.0
        %1208 = vmatpush1.msra.mxu0 %v1188
        %1209 = vmatprep.subr.mxu0 0.0
        %1210 = vmatpush1.msra.mxu0 %v1187
        %1211 = vmatprep.subr.mxu0 0.0
        %1212 = vmatpush1.msra.mxu0 %v1186
        %1213 = vmatprep.subr.mxu0 0.0
        %1214 = vmatpush1.msra.mxu0 %v1185
        %1215 = vmatprep.subr.mxu0 0.0
        %1216 = vmatpush1.msra.mxu0 %v1184
        %1217 = vmatprep.subr.mxu0 0.0
        %1218 = vmatpush1.msra.mxu0 %v1183
        %1219 = vmatprep.subr.mxu0 0.0
        %1220 = vmatpush1.msra.mxu0 %v1182
        %1221 = vmatprep.subr.mxu0 0.0
        %1222 = vmatpush1.msra.mxu0 %v1181
        %1223 = vmatprep.subr.mxu0 0.0
        %1224 = vmatpush1.msra.mxu0 %v1180
        %1225 = vmatprep.subr.mxu0 0.0
        %1226 = vmatpush1.msra.mxu0 %v1179
        %1227 = vmatprep.subr.mxu0 0.0
        %1228 = vmatpush2.msra.mxu0 0.0
        %1229 = vmatprep.subr.mxu0 0.0
        %1230 = vmatpush2.msra.mxu0 0.0
        %1231 = vmatprep.subr.mxu0 0.0
        %1232 = vmatpush2.msra.mxu0 0.0
        %1233 = vmatprep.subr.mxu0 0.0
        %1234 = vmatpush2.msra.mxu0 0.0
        %1235 = vmatprep.subr.mxu0 0.0
        %1236 = vmatpush2.msra.mxu0 0.0
        %1237 = vmatprep.subr.mxu0 0.0
        %1238 = vmatpush2.msra.mxu0 0.0
        %1239 = vmatprep.subr.mxu0 0.0
        %1240 = vmatpush2.msra.mxu0 0.0
        %1241 = vmatprep.subr.mxu0 0.0
        %1242 = vmatpush2.msra.mxu0 0.0
        %1243 = vmatprep.subr.mxu0 0.0
        %1244 = vmatpush2.msra.mxu0 0.0
        %1245 = vmatprep.subr.mxu0 0.0
        %1246 = vmatpush2.msra.mxu0 0.0
        %1247 = vmatprep.subr.mxu0 0.0
        %1248 = vmatpush2.msra.mxu0 0.0
        %1249 = vmatprep.subr.mxu0 0.0
        %1250 = vmatpush2.msra.mxu0 0.0
        %1251 = vmatprep.subr.mxu0 0.0
        %1252 = vmatpush2.msra.mxu0 0.0
        %1253 = vmatprep.subr.mxu0 0.0
        %1254 = vmatpush2.msra.mxu0 0.0
        %1255 = vmatprep.subr.mxu0 0.0
        %1256 = vmatpush2.msra.mxu0 0.0
        %1257 = vmatprep.subr.mxu0 0.0
        %1258 = vmatpush2.msra.mxu0 0.0
        %1259 = vmatprep.mubr.f32.mxu0 0.0
        %1260 = vmatmul.mubr.f32.gmra.mxu0 %v1174
        %v1261 = vpop.f32.mrf.mxu0
        %v1262 = vadd.f32 0.0, %v1261
        %v1263 = vpop.f32.mrf.mxu0
        %1264 = vmatprep.mubr.f32.mxu0 0.0
        %1265 = vmatmul.mubr.f32.gmra.mxu0 %v1177
        %v1266 = vpop.f32.mrf.mxu0
        %v1267 = vadd.f32 0.0, %v1266
        %v1268 = vpop.f32.mrf.mxu0
        %1269 = vdwg.mxu0
        %v1270 = vadd.f32 %v1163, %v1262
        %v1271 = vadd.f32 %v1168, %v1267
        %v1272 = vlaneseq
        %v1273 = vshrl.u32 %v1272, 7
        %v1274 = vsub.s32 3, %v1273
        %v1275 = vrot.slane %v511, %v1274
        %v1276 = vmul.f32 %v1275, %v896
        %v1277 = vmul.f32 %v1275, %v901
        %v1278 = vlaneseq
        %v1279 = vshrl.u32 %v1278, 7
        %v1280 = vsub.s32 4, %v1279
        %v1281 = vrot.slane %v511, %v1280
        %v1282 = vadd.f32 %v1276, %v1281
        %v1283 = vadd.f32 %v1277, %v1281
        %v1284 = vmul.f32 %v1270, %v1282
        %v1285 = vmul.f32 %v1271, %v1283
        %vm1286 = vcmp.gt.f32.partialorder %v1284, 20.0
        %vm1287 = vcmp.gt.f32.partialorder %v1285, 20.0
        %v1288 = vmin.f32 %v1284, 20.0
        %v1289 = vmin.f32 %v1285, 20.0
        %v1290 = vmul.f32 %v1288, 1.442695
        %v1291 = vpow.pop %v1290
        %v1292 = vmul.f32 %v1289, 1.442695
        %v1293 = vpow.pop %v1292
        %v1294 = vadd.f32 %v1291, 1.0
        %v1295 = vlog2.pop %v1294
        %v1296 = vmul.f32 %v1295, 0.6931472
        %v1297 = vmul.f32 -0.5, %v1291
        %v1298 = vadd.f32 %v1297, 1.0
        %v1299 = vmul.f32 %v1298, %v1291
        %v1300 = vand.u32 2147483647, %v1291
        %vm1301 = vcmp.lt.f32.partialorder %v1300, 0.0004427343
        %v1302 = vsel %vm1301, %v1299, %v1296
        %v1303 = vadd.f32 %v1293, 1.0
        %v1304 = vlog2.pop %v1303
        %v1305 = vmul.f32 %v1304, 0.6931472
        %v1306 = vmul.f32 -0.5, %v1293
        %v1307 = vadd.f32 %v1306, 1.0
        %v1308 = vmul.f32 %v1307, %v1293
        %v1309 = vand.u32 2147483647, %v1293
        %vm1310 = vcmp.lt.f32.partialorder %v1309, 0.0004427343
        %v1311 = vsel %vm1310, %v1308, %v1305
        %v1312 = vsel %vm1286, %v1284, %v1302
        %v1313 = vsel %vm1287, %v1285, %v1311
        %v1314 = vld [vmem:[%s438] sm:$0xff]
        %v1315 = vld [vmem:[%s438 + $0x8] sm:$0xff]
        %v1316 = vsub.f32 %v1314, %v1312
        %v1317 = vsub.f32 %v1315, %v1313
        %vm1318 = vcmp.gt.f32.partialorder %v1316, 20.0
        %vm1319 = vcmp.gt.f32.partialorder %v1317, 20.0
        %v1320 = vmin.f32 %v1316, 20.0
        %v1321 = vmin.f32 %v1317, 20.0
        %v1322 = vmul.f32 %v1320, 1.442695
        %v1323 = vpow.pop %v1322
        %v1324 = vmul.f32 %v1321, 1.442695
        %v1325 = vpow.pop %v1324
        %v1326 = vadd.f32 %v1323, 1.0
        %v1327 = vlog2.pop %v1326
        %v1328 = vmul.f32 %v1327, 0.6931472
        %v1329 = vmul.f32 -0.5, %v1323
        %v1330 = vadd.f32 %v1329, 1.0
        %v1331 = vmul.f32 %v1330, %v1323
        %v1332 = vand.u32 2147483647, %v1323
        %vm1333 = vcmp.lt.f32.partialorder %v1332, 0.0004427343
        %v1334 = vsel %vm1333, %v1331, %v1328
        %v1335 = vadd.f32 %v1325, 1.0
        %v1336 = vlog2.pop %v1335
        %v1337 = vmul.f32 %v1336, 0.6931472
        %v1338 = vmul.f32 -0.5, %v1325
        %v1339 = vadd.f32 %v1338, 1.0
        %v1340 = vmul.f32 %v1339, %v1325
        %v1341 = vand.u32 2147483647, %v1325
        %vm1342 = vcmp.lt.f32.partialorder %v1341, 0.0004427343
        %v1343 = vsel %vm1342, %v1340, %v1337
        %v1344 = vsel %vm1318, %v1316, %v1334
        %v1345 = vsel %vm1319, %v1317, %v1343
        %v1346 = vld [vmem:[#allocation11] sm:$0xff]
        %v1347 = vld [vmem:[#allocation11 + $0x8] sm:$0xff]
        %v1348 = vld [vmem:[#allocation11 + $0x10] sm:$0xff]
        %v1349 = vld [vmem:[#allocation11 + $0x18] sm:$0xff]
        %v1350 = vld [vmem:[#allocation11 + $0x20] sm:$0xff]
        %v1351 = vld [vmem:[#allocation11 + $0x28] sm:$0xff]
        %v1352 = vld [vmem:[#allocation11 + $0x30] sm:$0xff]
        %v1353 = vld [vmem:[#allocation11 + $0x38] sm:$0xff]
        %v1354 = vld [vmem:[#allocation11 + $0x40] sm:$0xff]
        %v1355 = vld [vmem:[#allocation11 + $0x48] sm:$0xff]
        %v1356 = vld [vmem:[#allocation11 + $0x50] sm:$0xff]
        %v1357 = vld [vmem:[#allocation11 + $0x58] sm:$0xff]
        %v1358 = vld [vmem:[#allocation11 + $0x60] sm:$0xff]
        %v1359 = vld [vmem:[#allocation11 + $0x68] sm:$0xff]
        %v1360 = vld [vmem:[#allocation11 + $0x70] sm:$0xff]
        %v1361 = vld [vmem:[#allocation11 + $0x78] sm:$0xff]
        %v1362 = vld [vmem:[#allocation11 + $0x80] sm:$0xff]
        %v1363 = vld [vmem:[#allocation11 + $0x88] sm:$0xff]
        %v1364 = vld [vmem:[#allocation11 + $0x90] sm:$0xff]
        %v1365 = vld [vmem:[#allocation11 + $0x98] sm:$0xff]
        %v1366 = vld [vmem:[#allocation11 + $0xa0] sm:$0xff]
        %v1367 = vld [vmem:[#allocation11 + $0xa8] sm:$0xff]
        %v1368 = vld [vmem:[#allocation11 + $0xb0] sm:$0xff]
        %v1369 = vld [vmem:[#allocation11 + $0xb8] sm:$0xff]
        %v1370 = vld [vmem:[#allocation11 + $0xc0] sm:$0xff]
        %v1371 = vld [vmem:[#allocation11 + $0xc8] sm:$0xff]
        %v1372 = vld [vmem:[#allocation11 + $0xd0] sm:$0xff]
        %v1373 = vld [vmem:[#allocation11 + $0xd8] sm:$0xff]
        %v1374 = vld [vmem:[#allocation11 + $0xe0] sm:$0xff]
        %v1375 = vld [vmem:[#allocation11 + $0xe8] sm:$0xff]
        %v1376 = vld [vmem:[#allocation11 + $0xf0] sm:$0xff]
        %v1377 = vld [vmem:[#allocation11 + $0xf8] sm:$0xff]
        %1378 = vmatprep.subr.mxu0 %v1377
        %1379 = vmatpush1.msra.mxu0 %v1376
        %1380 = vmatprep.subr.mxu0 %v1375
        %1381 = vmatpush1.msra.mxu0 %v1374
        %1382 = vmatprep.subr.mxu0 %v1373
        %1383 = vmatpush1.msra.mxu0 %v1372
        %1384 = vmatprep.subr.mxu0 %v1371
        %1385 = vmatpush1.msra.mxu0 %v1370
        %1386 = vmatprep.subr.mxu0 %v1369
        %1387 = vmatpush1.msra.mxu0 %v1368
        %1388 = vmatprep.subr.mxu0 %v1367
        %1389 = vmatpush1.msra.mxu0 %v1366
        %1390 = vmatprep.subr.mxu0 %v1365
        %1391 = vmatpush1.msra.mxu0 %v1364
        %1392 = vmatprep.subr.mxu0 %v1363
        %1393 = vmatpush1.msra.mxu0 %v1362
        %1394 = vmatprep.subr.mxu0 %v1361
        %1395 = vmatpush1.msra.mxu0 %v1360
        %1396 = vmatprep.subr.mxu0 %v1359
        %1397 = vmatpush1.msra.mxu0 %v1358
        %1398 = vmatprep.subr.mxu0 %v1357
        %1399 = vmatpush1.msra.mxu0 %v1356
        %1400 = vmatprep.subr.mxu0 %v1355
        %1401 = vmatpush1.msra.mxu0 %v1354
        %1402 = vmatprep.subr.mxu0 %v1353
        %1403 = vmatpush1.msra.mxu0 %v1352
        %1404 = vmatprep.subr.mxu0 %v1351
        %1405 = vmatpush1.msra.mxu0 %v1350
        %1406 = vmatprep.subr.mxu0 %v1349
        %1407 = vmatpush1.msra.mxu0 %v1348
        %1408 = vmatprep.subr.mxu0 %v1347
        %1409 = vmatpush1.msra.mxu0 %v1346
        %1410 = vmatprep.subr.mxu0 0.0
        %1411 = vmatpush2.msra.mxu0 0.0
        %1412 = vmatprep.subr.mxu0 0.0
        %1413 = vmatpush2.msra.mxu0 0.0
        %1414 = vmatprep.subr.mxu0 0.0
        %1415 = vmatpush2.msra.mxu0 0.0
        %1416 = vmatprep.subr.mxu0 0.0
        %1417 = vmatpush2.msra.mxu0 0.0
        %1418 = vmatprep.subr.mxu0 0.0
        %1419 = vmatpush2.msra.mxu0 0.0
        %1420 = vmatprep.subr.mxu0 0.0
        %1421 = vmatpush2.msra.mxu0 0.0
        %1422 = vmatprep.subr.mxu0 0.0
        %1423 = vmatpush2.msra.mxu0 0.0
        %1424 = vmatprep.subr.mxu0 0.0
        %1425 = vmatpush2.msra.mxu0 0.0
        %1426 = vmatprep.subr.mxu0 0.0
        %1427 = vmatpush2.msra.mxu0 0.0
        %1428 = vmatprep.subr.mxu0 0.0
        %1429 = vmatpush2.msra.mxu0 0.0
        %1430 = vmatprep.subr.mxu0 0.0
        %1431 = vmatpush2.msra.mxu0 0.0
        %1432 = vmatprep.subr.mxu0 0.0
        %1433 = vmatpush2.msra.mxu0 0.0
        %1434 = vmatprep.subr.mxu0 0.0
        %1435 = vmatpush2.msra.mxu0 0.0
        %1436 = vmatprep.subr.mxu0 0.0
        %1437 = vmatpush2.msra.mxu0 0.0
        %1438 = vmatprep.subr.mxu0 0.0
        %1439 = vmatpush2.msra.mxu0 0.0
        %1440 = vmatprep.subr.mxu0 0.0
        %1441 = vmatpush2.msra.mxu0 0.0
        %1442 = vmatprep.mubr.f32.mxu0 0.0
        %1443 = vmatmul.mubr.f32.gmra.mxu0 %v1344
        %v1444 = vpop.f32.mrf.mxu0
        %v1445 = vadd.f32 0.0, %v1444
        %v1446 = vpop.f32.mrf.mxu0
        %v1447 = vadd.f32 0.0, %v1446
        %1448 = vmatprep.mubr.f32.mxu0 0.0
        %1449 = vmatmul.mubr.f32.gmra.mxu0 %v1345
        %v1450 = vpop.f32.mrf.mxu0
        %v1451 = vadd.f32 0.0, %v1450
        %v1452 = vpop.f32.mrf.mxu0
        %v1453 = vadd.f32 0.0, %v1452
        %1454 = vdwg.mxu0
        %v1455 = vlaneseq
        %v1456 = vshrl.u32 %v1455, 7
        %v1457 = vsub.s32 2, %v1456
        %v1458 = vrot.slane %v511, %v1457
        %v1459 = vadd.f32 %v1447, %v1458
        %v1460 = vadd.f32 %v1453, %v1458
        %v1461 = vsub.f32 0.0, %v1459
        %v1462 = vsub.f32 0.0, %v1460
        %v1463 = vmul.f32 %v1461, 1.442695
        %v1464 = vpow.pop %v1463
        %v1465 = vmul.f32 %v1462, 1.442695
        %v1466 = vpow.pop %v1465
        %v1467 = vadd.f32 %v1464, 1.0
        %v1468 = vadd.f32 %v1466, 1.0
        %v1469 = vrcp.pop %v1467
        %v1470 = vrcp.pop %v1468
        %v1473 = vrot.slane %v1344, 7
        %v1474 = vrot.slane %v1345, 7
        %v1475 = vsel %vm998, %v1473, %v1474
        %v1478 = vsel %vm998, 0.0, %v1473
        %v1479 = vld [vmem:[#allocation13] sm:$0xff]
        %v1480 = vld [vmem:[#allocation13 + $0x8] sm:$0xff]
        %v1481 = vld [vmem:[#allocation13 + $0x10] sm:$0xff]
        %v1482 = vld [vmem:[#allocation13 + $0x18] sm:$0xff]
        %v1483 = vld [vmem:[#allocation13 + $0x20] sm:$0xff]
        %v1484 = vld [vmem:[#allocation13 + $0x28] sm:$0xff]
        %v1485 = vld [vmem:[#allocation13 + $0x30] sm:$0xff]
        %v1486 = vld [vmem:[#allocation13 + $0x38] sm:$0xff]
        %v1487 = vld [vmem:[#allocation13 + $0x40] sm:$0xff]
        %v1488 = vld [vmem:[#allocation13 + $0x48] sm:$0xff]
        %v1489 = vld [vmem:[#allocation13 + $0x50] sm:$0xff]
        %v1490 = vld [vmem:[#allocation13 + $0x58] sm:$0xff]
        %v1491 = vld [vmem:[#allocation13 + $0x60] sm:$0xff]
        %v1492 = vld [vmem:[#allocation13 + $0x68] sm:$0xff]
        %v1493 = vld [vmem:[#allocation13 + $0x70] sm:$0xff]
        %v1494 = vld [vmem:[#allocation13 + $0x78] sm:$0xff]
        %1495 = vmatprep.subr.mxu0 0.0
        %1496 = vmatpush1.msra.mxu0 %v1494
        %1497 = vmatprep.subr.mxu0 0.0
        %1498 = vmatpush1.msra.mxu0 %v1493
        %1499 = vmatprep.subr.mxu0 0.0
        %1500 = vmatpush1.msra.mxu0 %v1492
        %1501 = vmatprep.subr.mxu0 0.0
        %1502 = vmatpush1.msra.mxu0 %v1491
        %1503 = vmatprep.subr.mxu0 0.0
        %1504 = vmatpush1.msra.mxu0 %v1490
        %1505 = vmatprep.subr.mxu0 0.0
        %1506 = vmatpush1.msra.mxu0 %v1489
        %1507 = vmatprep.subr.mxu0 0.0
        %1508 = vmatpush1.msra.mxu0 %v1488
        %1509 = vmatprep.subr.mxu0 0.0
        %1510 = vmatpush1.msra.mxu0 %v1487
        %1511 = vmatprep.subr.mxu0 0.0
        %1512 = vmatpush1.msra.mxu0 %v1486
        %1513 = vmatprep.subr.mxu0 0.0
        %1514 = vmatpush1.msra.mxu0 %v1485
        %1515 = vmatprep.subr.mxu0 0.0
        %1516 = vmatpush1.msra.mxu0 %v1484
        %1517 = vmatprep.subr.mxu0 0.0
        %1518 = vmatpush1.msra.mxu0 %v1483
        %1519 = vmatprep.subr.mxu0 0.0
        %1520 = vmatpush1.msra.mxu0 %v1482
        %1521 = vmatprep.subr.mxu0 0.0
        %1522 = vmatpush1.msra.mxu0 %v1481
        %1523 = vmatprep.subr.mxu0 0.0
        %1524 = vmatpush1.msra.mxu0 %v1480
        %1525 = vmatprep.subr.mxu0 0.0
        %1526 = vmatpush1.msra.mxu0 %v1479
        %1527 = vmatprep.subr.mxu0 0.0
        %1528 = vmatpush2.msra.mxu0 0.0
        %1529 = vmatprep.subr.mxu0 0.0
        %1530 = vmatpush2.msra.mxu0 0.0
        %1531 = vmatprep.subr.mxu0 0.0
        %1532 = vmatpush2.msra.mxu0 0.0
        %1533 = vmatprep.subr.mxu0 0.0
        %1534 = vmatpush2.msra.mxu0 0.0
        %1535 = vmatprep.subr.mxu0 0.0
        %1536 = vmatpush2.msra.mxu0 0.0
        %1537 = vmatprep.subr.mxu0 0.0
        %1538 = vmatpush2.msra.mxu0 0.0
        %1539 = vmatprep.subr.mxu0 0.0
        %1540 = vmatpush2.msra.mxu0 0.0
        %1541 = vmatprep.subr.mxu0 0.0
        %1542 = vmatpush2.msra.mxu0 0.0
        %1543 = vmatprep.subr.mxu0 0.0
        %1544 = vmatpush2.msra.mxu0 0.0
        %1545 = vmatprep.subr.mxu0 0.0
        %1546 = vmatpush2.msra.mxu0 0.0
        %1547 = vmatprep.subr.mxu0 0.0
        %1548 = vmatpush2.msra.mxu0 0.0
        %1549 = vmatprep.subr.mxu0 0.0
        %1550 = vmatpush2.msra.mxu0 0.0
        %1551 = vmatprep.subr.mxu0 0.0
        %1552 = vmatpush2.msra.mxu0 0.0
        %1553 = vmatprep.subr.mxu0 0.0
        %1554 = vmatpush2.msra.mxu0 0.0
        %1555 = vmatprep.subr.mxu0 0.0
        %1556 = vmatpush2.msra.mxu0 0.0
        %1557 = vmatprep.subr.mxu0 0.0
        %1558 = vmatpush2.msra.mxu0 0.0
        %1559 = vmatprep.mubr.f32.mxu0 0.0
        %1560 = vmatmul.mubr.f32.gmra.mxu0 %v1478
        %v1561 = vpop.f32.mrf.mxu0
        %v1562 = vadd.f32 0.0, %v1561
        %v1563 = vpop.f32.mrf.mxu0
        %1564 = vmatprep.mubr.f32.mxu0 0.0
        %1565 = vmatmul.mubr.f32.gmra.mxu0 %v1475
        %v1566 = vpop.f32.mrf.mxu0
        %v1567 = vadd.f32 0.0, %v1566
        %v1568 = vpop.f32.mrf.mxu0
        %1569 = vdwg.mxu0
        %v1570 = vadd.f32 %v1445, %v1562
        %v1571 = vadd.f32 %v1451, %v1567
        %v1572 = vrot.slane %v1344, 1
        %v1573 = vrot.slane %v1345, 1
        %v1574 = vsel %vm1171, %v1572, %v1573
        %v1577 = vsel %vm1171, %v1573, 0.0
        %s1578 = scalar_lea.vmem [#allocation13], 128
        %v1579 = vld [vmem:[%s1578] sm:$0xff]
        %v1580 = vld [vmem:[%s1578 + $0x8] sm:$0xff]
        %v1581 = vld [vmem:[%s1578 + $0x10] sm:$0xff]
        %v1582 = vld [vmem:[%s1578 + $0x18] sm:$0xff]
        %v1583 = vld [vmem:[%s1578 + $0x20] sm:$0xff]
        %v1584 = vld [vmem:[%s1578 + $0x28] sm:$0xff]
        %v1585 = vld [vmem:[%s1578 + $0x30] sm:$0xff]
        %v1586 = vld [vmem:[%s1578 + $0x38] sm:$0xff]
        %v1587 = vld [vmem:[%s1578 + $0x40] sm:$0xff]
        %v1588 = vld [vmem:[%s1578 + $0x48] sm:$0xff]
        %v1589 = vld [vmem:[%s1578 + $0x50] sm:$0xff]
        %v1590 = vld [vmem:[%s1578 + $0x58] sm:$0xff]
        %v1591 = vld [vmem:[%s1578 + $0x60] sm:$0xff]
        %v1592 = vld [vmem:[%s1578 + $0x68] sm:$0xff]
        %v1593 = vld [vmem:[%s1578 + $0x70] sm:$0xff]
        %v1594 = vld [vmem:[%s1578 + $0x78] sm:$0xff]
        %1595 = vmatprep.subr.mxu0 0.0
        %1596 = vmatpush1.msra.mxu0 %v1594
        %1597 = vmatprep.subr.mxu0 0.0
        %1598 = vmatpush1.msra.mxu0 %v1593
        %1599 = vmatprep.subr.mxu0 0.0
        %1600 = vmatpush1.msra.mxu0 %v1592
        %1601 = vmatprep.subr.mxu0 0.0
        %1602 = vmatpush1.msra.mxu0 %v1591
        %1603 = vmatprep.subr.mxu0 0.0
        %1604 = vmatpush1.msra.mxu0 %v1590
        %1605 = vmatprep.subr.mxu0 0.0
        %1606 = vmatpush1.msra.mxu0 %v1589
        %1607 = vmatprep.subr.mxu0 0.0
        %1608 = vmatpush1.msra.mxu0 %v1588
        %1609 = vmatprep.subr.mxu0 0.0
        %1610 = vmatpush1.msra.mxu0 %v1587
        %1611 = vmatprep.subr.mxu0 0.0
        %1612 = vmatpush1.msra.mxu0 %v1586
        %1613 = vmatprep.subr.mxu0 0.0
        %1614 = vmatpush1.msra.mxu0 %v1585
        %1615 = vmatprep.subr.mxu0 0.0
        %1616 = vmatpush1.msra.mxu0 %v1584
        %1617 = vmatprep.subr.mxu0 0.0
        %1618 = vmatpush1.msra.mxu0 %v1583
        %1619 = vmatprep.subr.mxu0 0.0
        %1620 = vmatpush1.msra.mxu0 %v1582
        %1621 = vmatprep.subr.mxu0 0.0
        %1622 = vmatpush1.msra.mxu0 %v1581
        %1623 = vmatprep.subr.mxu0 0.0
        %1624 = vmatpush1.msra.mxu0 %v1580
        %1625 = vmatprep.subr.mxu0 0.0
        %1626 = vmatpush1.msra.mxu0 %v1579
        %1627 = vmatprep.subr.mxu0 0.0
        %1628 = vmatpush2.msra.mxu0 0.0
        %1629 = vmatprep.subr.mxu0 0.0
        %1630 = vmatpush2.msra.mxu0 0.0
        %1631 = vmatprep.subr.mxu0 0.0
        %1632 = vmatpush2.msra.mxu0 0.0
        %1633 = vmatprep.subr.mxu0 0.0
        %1634 = vmatpush2.msra.mxu0 0.0
        %1635 = vmatprep.subr.mxu0 0.0
        %1636 = vmatpush2.msra.mxu0 0.0
        %1637 = vmatprep.subr.mxu0 0.0
        %1638 = vmatpush2.msra.mxu0 0.0
        %1639 = vmatprep.subr.mxu0 0.0
        %1640 = vmatpush2.msra.mxu0 0.0
        %1641 = vmatprep.subr.mxu0 0.0
        %1642 = vmatpush2.msra.mxu0 0.0
        %1643 = vmatprep.subr.mxu0 0.0
        %1644 = vmatpush2.msra.mxu0 0.0
        %1645 = vmatprep.subr.mxu0 0.0
        %1646 = vmatpush2.msra.mxu0 0.0
        %1647 = vmatprep.subr.mxu0 0.0
        %1648 = vmatpush2.msra.mxu0 0.0
        %1649 = vmatprep.subr.mxu0 0.0
        %1650 = vmatpush2.msra.mxu0 0.0
        %1651 = vmatprep.subr.mxu0 0.0
        %1652 = vmatpush2.msra.mxu0 0.0
        %1653 = vmatprep.subr.mxu0 0.0
        %1654 = vmatpush2.msra.mxu0 0.0
        %1655 = vmatprep.subr.mxu0 0.0
        %1656 = vmatpush2.msra.mxu0 0.0
        %1657 = vmatprep.subr.mxu0 0.0
        %1658 = vmatpush2.msra.mxu0 0.0
        %1659 = vmatprep.mubr.f32.mxu0 0.0
        %1660 = vmatmul.mubr.f32.gmra.mxu0 %v1574
        %v1661 = vpop.f32.mrf.mxu0
        %v1662 = vadd.f32 0.0, %v1661
        %v1663 = vpop.f32.mrf.mxu0
        %1664 = vmatprep.mubr.f32.mxu0 0.0
        %1665 = vmatmul.mubr.f32.gmra.mxu0 %v1577
        %v1666 = vpop.f32.mrf.mxu0
        %v1667 = vadd.f32 0.0, %v1666
        %v1668 = vpop.f32.mrf.mxu0
        %1669 = vdwg.mxu0
        %v1670 = vadd.f32 %v1570, %v1662
        %v1671 = vadd.f32 %v1571, %v1667
        %v1672 = vadd.f32 %v1344, %v1670
        %v1673 = vadd.f32 %v1345, %v1671
        %v1674 = vlaneseq
        %v1675 = vshrl.u32 %v1674, 7
        %v1676 = vsub.s32 6, %v1675
        %v1677 = vrot.slane %v511, %v1676
        %v1678 = vmul.f32 %v1677, %v1672
        %v1679 = vmul.f32 %v1677, %v1673
        %v1680 = vlaneseq
        %v1681 = vshrl.u32 %v1680, 7
        %v1682 = vsub.s32 5, %v1681
        %v1683 = vrot.slane %v511, %v1682
        %v1684 = vmul.f32 %v1683, %v1344
        %v1685 = vmul.f32 %v1683, %v1345
        %v1686 = vmul.f32 %v1684, %v1670
        %v1687 = vmul.f32 %v1685, %v1671
        %v1688 = vadd.f32 %v1678, %v1686
        %v1689 = vadd.f32 %v1679, %v1687
        %vm1690 = vcmp.gt.f32.partialorder %v1688, 20.0
        %vm1691 = vcmp.gt.f32.partialorder %v1689, 20.0
        %v1692 = vmin.f32 %v1688, 20.0
        %v1693 = vmin.f32 %v1689, 20.0
        %v1694 = vmul.f32 %v1692, 1.442695
        %v1695 = vpow.pop %v1694
        %v1696 = vmul.f32 %v1693, 1.442695
        %v1697 = vpow.pop %v1696
        %v1698 = vadd.f32 %v1695, 1.0
        %v1699 = vlog2.pop %v1698
        %v1700 = vmul.f32 %v1699, 0.6931472
        %v1701 = vmul.f32 -0.5, %v1695
        %v1702 = vadd.f32 %v1701, 1.0
        %v1703 = vmul.f32 %v1702, %v1695
        %v1704 = vand.u32 2147483647, %v1695
        %vm1705 = vcmp.lt.f32.partialorder %v1704, 0.0004427343
        %v1706 = vsel %vm1705, %v1703, %v1700
        %v1707 = vadd.f32 %v1697, 1.0
        %v1708 = vlog2.pop %v1707
        %v1709 = vmul.f32 %v1708, 0.6931472
        %v1710 = vmul.f32 -0.5, %v1697
        %v1711 = vadd.f32 %v1710, 1.0
        %v1712 = vmul.f32 %v1711, %v1697
        %v1713 = vand.u32 2147483647, %v1697
        %vm1714 = vcmp.lt.f32.partialorder %v1713, 0.0004427343
        %v1715 = vsel %vm1714, %v1712, %v1709
        %v1716 = vsel %vm1690, %v1688, %v1706
        %v1717 = vsel %vm1691, %v1689, %v1715
        %v1718 = vsub.f32 1.0, %v1469
        %v1719 = vsub.f32 1.0, %v1470
        %v1720 = vmul.f32 %v1718, %v1314
        %v1721 = vmul.f32 %v1719, %v1315
        %v1722 = vmul.f32 %v1469, %v1716
        %v1723 = vmul.f32 %v1470, %v1717
        %v1724 = vadd.f32 %v1720, %v1722
        %v1725 = vadd.f32 %v1721, %v1723
        %1726 = vst [vmem:[%s504] sm:$0xff] %v1724
        %1727 = vst [vmem:[%s504 + $0x8] sm:$0xff] %v1725
        %s1728 = sand.u32 %s280, 1
        %s1729 = scalar_lea.sflag [#allocation4], %s1728
        %s1730 = sand.u32 %s280, 1
        %s1731 = smul.addr %s1730, 16
        %s1732 = scalar_lea.vmem [#allocation14], %s1731
        // Predicated region
        $region93: #{tpu_custom_call.1} parent=63 // pred_check
          %p1733 = pneg %p290
        $region94: #{tpu_custom_call.1} parent=63 // pred_check_branch
          %1735 = sbr.rel (%p1733) target = $region96
        $region95: #{tpu_custom_call.1} parent=63 // pred_region
          %s1736 = smul.u32 2, %s31
          %s1738 = ssub.s32 256, 256
          %1739 = vsyncadd %s1729, %s1738
          %s1740 = smul.addr %s1736, 128
          %s1741 = scalar_lea.hbm %s11, %s1740
          %s1742 = sshll.u32 %s1732, 4
          %s1743 = int_to_ptr.vmem [resolvable:$true] %s1742
          %1748 = dma.vmem_to_hbm [thread:$0]  %s1743, 256, %s1741, %s1729, 128, 128, 8
        $region96: #{tpu_custom_call.1} parent=63 // pred_fallthru
          _
      $region64: #{tpu_custom_call.1} parent=5 // pred_fallthru
        _
      %p1749 = scmp.le.s32.totalorder 2, %s26
      // Predicated region
      $region97: #{tpu_custom_call.1} parent=5 // pred_check
        %p1750 = pneg %p1749
      $region98: #{tpu_custom_call.1} parent=5 // pred_check_branch
        %1752 = sbr.rel (%p1750) target = $region100
      $region99: #{tpu_custom_call.1} parent=5 // pred_region
        %s1753 = ssub.s32 %s26, 2
        // Predicated region
        $region101: #{tpu_custom_call.1} parent=99 // pred_check
          %p1754 = pneg %p296
        $region102: #{tpu_custom_call.1} parent=99 // pred_check_branch
          %1756 = sbr.rel (%p1754) target = $region104
        $region103: #{tpu_custom_call.1} parent=99 // pred_region
          %s1757 = sand.u32 %s281, 1
          %s1758 = scalar_lea.sflag [#allocation4], %s1757
          %s1759 = sand.u32 %s281, 1
          %s1760 = smul.addr %s1759, 16
          %s1761 = scalar_lea.vmem [#allocation14], %s1760
          %1762 = dma.done %s1758, 256
        $region104: #{tpu_custom_call.1} parent=99 // pred_fallthru
          _
      $region100: #{tpu_custom_call.1} parent=5 // pred_fallthru
        _
    $region6: #{tpu_custom_call.1} parent=1 // loop_footer
      %s30 = sadd.s32 1, %s26
    $region7: #{tpu_custom_call.1} parent=1 // loop_footer_branch
      %25 = sbr.rel target = $region3
    $region8: #{tpu_custom_call.1} parent=1 // loop_exit
      _
    %1763 = vsyncpa [#allocation3], 1
    %s1764 = scalar_lea.sflag [#allocation3], 1
    %1765 = vsyncpa %s1764, 1
    %1766 = vsyncpa [#allocation6], 1
    %1767 = vsyncpa [#allocation9], 1
    %1768 = vsyncpa [#allocation12], 1
    %1769 = vsyncpa [#allocation4], 1
    %s1770 = scalar_lea.sflag [#allocation4], 1
    %1771 = vsyncpa %s1770, 1

</llo_original>
